<compile_context>
chip_gen: v7x
topology: tpu7x:2x2x1
jax: 0.10.0
libtpu: 0.0.40
codegen_flags: <defaults>
</compile_context>

<pallas_src>
import numpy as np
import jax
import jax.numpy as jnp
from jax.experimental import pallas as pl
from jax.experimental.pallas import tpu as pltpu


def _round_up(a: int, b: int) -> int:
    return ((a + b - 1) // b) * b


def _cdiv(a: int, b: int) -> int:
    return -(-a // b)


# ----------------------------------------------------------------------------
# Static basis-frequency tables (equivalent of GetKL + the 4-way concat order
# used inside iFun).  Compile-time constants.
# ----------------------------------------------------------------------------
def _get_kl(inP: int):
    v = np.pi / inP * (inP - 1)
    k1 = np.concatenate([-np.arange(0, inP // 2), [-0.5]]).astype(np.float64) * v
    k2 = np.concatenate([-np.arange(1, inP // 2), [-0.5]]).astype(np.float64) * v
    l1 = np.concatenate([-np.arange(0, inP // 2), [-0.5]]).astype(np.float64) * v
    l2 = np.concatenate([np.arange(1, inP // 2), [0.5]]).astype(np.float64) * v
    return (k1.astype(np.float32), k2.astype(np.float32),
            l1.astype(np.float32), l2.astype(np.float32))


def _build_tables(inP: int, out_dim: int):
    """Constant tables for the kernel.

    klp : (8, P2p)    rows 0..2 = kk, ll, phase (zero-padded to P2p=32);
                      row 3 lanes 0..1 = [0, pi/2]  (cos/sin phase pair).
    E   : (P2p, NC)   0/1 expansion: column i*out_dim+n <- basis i.
    S   : (NC, NPAD)  0/1 selection: out channel n <- sum_i column i*out_dim+n
                      (lane dim padded to 128 for a clean MXU output tile).
    """
    P2 = inP * inP
    P2p = _round_up(P2, 8)
    NC = P2 * out_dim
    NPAD = _round_up(out_dim, 128)

    k1, k2, l1, l2 = _get_kl(inP)
    # segment order matches the torch concat: cos(k1,l1), cos(k2,l2),
    # sin(k1,l2), sin(k2,l1);  sin(x) == cos(x - pi/2)  -> phase fold.
    segs = [(k1, l1, 0.0), (k2, l2, 0.0),
            (k1, l2, -np.pi / 2), (k2, l1, -np.pi / 2)]
    kk, ll, ph = [], [], []
    for ka, la, p in segs:
        kk.append(np.repeat(ka, len(la)))   # k outer (row-major reshape order)
        ll.append(np.tile(la, len(ka)))     # l inner
        ph.append(np.full(len(ka) * len(la), p))
    kk = np.concatenate(kk)
    ll = np.concatenate(ll)
    ph = np.concatenate(ph)
    assert kk.shape[0] == P2

    klp = np.zeros((8, P2p), np.float32)
    klp[0, :P2] = kk
    klp[1, :P2] = ll
    klp[2, :P2] = ph
    klp[3, 1] = np.pi / 2                   # [0, pi/2] phase pair for cos/sin

    E = np.zeros((P2p, NC), np.float32)
    for i in range(P2):
        E[i, i * out_dim:(i + 1) * out_dim] = 1.0

    S = np.zeros((NC, NPAD), np.float32)
    for j in range(NC):
        S[j, j % out_dim] = 1.0

    return jnp.asarray(klp), jnp.asarray(E), jnp.asarray(S)


# ----------------------------------------------------------------------------
# Kernel
# ----------------------------------------------------------------------------
def _make_kernel(out_dim: int, inP: int):
    P2 = inP * inP
    NC = P2 * out_dim
    f32 = jnp.float32
    hp = jax.lax.Precision.HIGHEST   # multi-pass f32 MXU; 0/1 weights are exact

    def kernel(klp_ref, e_ref, s_ref, x_ref, out_ref):
        # ---- per-row parameter prologue ------------------------------------
        # x columns: [0:NC) coef, NC+0 theta, +1 sx-1, +2 sy-1, +3 tx, +4 ty,
        #            +5 x, +6 y   (the module uses x/2, y/2)
        fp = x_ref[:, NC:NC + 7].astype(f32)           # (TB, 7), sliced once
        th = fp[:, 0:1]                                # (TB, 1)
        phase2 = klp_ref[3:4, 0:2]                     # (1, 2) = [0, pi/2]
        cs = jnp.cos(th - phase2)                      # (TB, 2) = [cos th, sin th]
        ct = cs[:, 0:1]
        st = cs[:, 1:2]
        p0 = fp[:, 5:7] * 0.5 + fp[:, 3:5]             # (TB, 2) = [X0, Y0]
        sc = fp[:, 1:3] + 1.0                          # (TB, 2) = [sx, sy]
        x0 = p0[:, 0:1]
        y0 = p0[:, 1:2]
        x1 = ct * x0 - st * y0
        # NOTE: bug-compatible with the PyTorch module — Y uses the NEW X.
        y1 = st * x1 + ct * y0
        x2 = sc[:, 0:1] * x1
        y2 = sc[:, 1:2] * y1

        # ---- deduplicated basis: one cos per distinct (k, l, phase) --------
        kk = klp_ref[0:1, :]                           # (1, P2p)
        ll = klp_ref[1:2, :]
        ph = klp_ref[2:3, :]
        basis = jnp.cos(x2 * kk + y2 * ll + ph)        # (TB, P2p); pad cols -> 1

        # ---- channel expansion + coef multiply + reduction (all MXU-heavy) --
        basis_exp = jnp.dot(basis, e_ref[...],
                            preferred_element_type=f32,
                            precision=hp)              # (TB, NC)
        prod = x_ref[:, :NC].astype(f32) * basis_exp   # (TB, NC)
        res = jnp.dot(prod, s_ref[...],
                      preferred_element_type=f32,
                      precision=hp)                    # (TB, NPAD)
        out_ref[...] = res[:, :out_dim].astype(out_ref.dtype)

    return kernel


# ----------------------------------------------------------------------------
# Wrapper
# ----------------------------------------------------------------------------
def f_fun_forward(x, out_dim: int, inP: int = 5, tile_rows: int = 1024):
    leading = x.shape[:-1]
    D = x.shape[-1]
    P2 = inP * inP
    NC = P2 * out_dim
    assert D == NC + 5 + 2, "last dim must be inP*inP*out_dim + 7"

    B = int(np.prod(leading)) if leading else 1
    x2 = x.reshape(B, D)                 # no dtype cast, no padding copy

    # Tile: multiple of 8 rows, >= 4 grid steps when possible
    # (>= 2 steps per v7x TensorCore so the DMA pipeline can overlap).
    TB = max(8, min(int(tile_rows), _round_up(_cdiv(B, 4), 8)))
    grid = (_cdiv(B, TB),)               # trailing partial block handled by Pallas

    klp, E, S = _build_tables(inP, out_dim)

    out = pl.pallas_call(
        _make_kernel(out_dim, inP),
        out_shape=jax.ShapeDtypeStruct((B, out_dim), jnp.float32),
        grid_spec=pltpu.PrefetchScalarGridSpec(
            num_scalar_prefetch=0,
            grid=grid,
            in_specs=[
                pl.BlockSpec(klp.shape, lambda i: (0, 0)),   # kk/ll/phase table
                pl.BlockSpec(E.shape, lambda i: (0, 0)),     # expansion 0/1
                pl.BlockSpec(S.shape, lambda i: (0, 0)),     # selection 0/1
                pl.BlockSpec((TB, D), lambda i: (i, 0)),     # row slab
            ],
            out_specs=pl.BlockSpec((TB, out_dim), lambda i: (i, 0)),
        ),
        compiler_params=pltpu.CompilerParams(
            dimension_semantics=("parallel",),
            vmem_limit_bytes=32 * 1024 * 1024,
        ),
    )(klp, E, S, x2)

    return out.reshape(*leading, out_dim)


# ----------------------------------------------------------------------------
# Pure-JAX reference mirroring the PyTorch forward (cos/sin + concat form).
# ----------------------------------------------------------------------------
def f_fun_reference(x, out_dim: int, inP: int = 5):
    leading = x.shape[:-1]
    D = x.shape[-1]
    P2 = inP * inP
    B = int(np.prod(leading)) if leading else 1
    x2 = x.reshape(B, D).astype(jnp.float32)

    xy = x2[:, -2:] / 2.0
    feat = x2[:, :-2]
    fpar = feat[:, -5:]
    coef = feat[:, :-5].reshape(B, P2, out_dim)

    X = xy[:, 0] + fpar[:, 3]
    Y = xy[:, 1] + fpar[:, 4]
    X = jnp.cos(fpar[:, 0]) * X - jnp.sin(fpar[:, 0]) * Y
    Y = jnp.sin(fpar[:, 0]) * X + jnp.cos(fpar[:, 0]) * Y   # uses new X (as torch)
    X = (fpar[:, 1] + 1.0) * X
    Y = (fpar[:, 2] + 1.0) * Y

    k1, k2, l1, l2 = map(jnp.asarray, _get_kl(inP))
    Xb = X[:, None, None]
    Yb = Y[:, None, None]

    def grid_cos(ka, la):
        return jnp.cos(ka[None, :, None] * Xb + la[None, None, :] * Yb).reshape(B, -1)

    def grid_sin(ka, la):
        return jnp.sin(ka[None, :, None] * Xb + la[None, None, :] * Yb).reshape(B, -1)

    basis = jnp.concatenate(
        [grid_cos(k1, l1), grid_cos(k2, l2), grid_sin(k1, l2), grid_sin(k2, l1)],
        axis=1)
    out = jnp.sum(coef * basis[:, :, None], axis=1)
    return out.reshape(*leading, out_dim)


if __name__ == "__main__":
    out_dim = 7
    inP = 5
    D = inP * inP * out_dim + 5 + 2          # 182
    x_shape = (2, 8, 8, D)                   # B = 128 rows

    key = jax.random.PRNGKey(0)
    x = jax.random.normal(key, x_shape, dtype=jnp.float32)

    y = jax.block_until_ready(f_fun_forward(x, out_dim, inP))
    y_ref = jax.block_until_ready(f_fun_reference(x, out_dim, inP))

    assert y.shape == (2, 8, 8, out_dim)
    # Tolerance 1e-4: sin -> cos(x - pi/2) fold and MXU (HIGHEST precision)
    # summation differ from the cos/sin + sequential-sum reference by a few
    # 1e-6 of float32 round-off — well below 1e-4, well above real bugs.
    np.testing.assert_allclose(np.asarray(y), np.asarray(y_ref),
                               rtol=1e-4, atol=1e-4)

    print("KERNEL_OK")
</pallas_src>

<mosaic_0001>
module attributes {stable_mosaic.version = 11 : i64} {
  func.func @kernel(%arg0: i32, %arg1: memref<8x32xf32, #tpu.memory_space<vmem>>, %arg2: memref<32x175xf32, #tpu.memory_space<vmem>>, %arg3: memref<175x128xf32, #tpu.memory_space<vmem>>, %arg4: memref<32x182xf32, #tpu.memory_space<vmem>>, %arg5: memref<32x7xf32, #tpu.memory_space<vmem>>) attributes {dimension_semantics = [#tpu.dimension_semantics<parallel>], iteration_bounds = array<i64: 4>, scalar_prefetch = 0 : i64, scratch_operands = 0 : i64, tpu.core_type = #tpu.core_type<tc>, window_params = [{pipeline_mode = #tpu.pipeline_mode<synchronous>, transform_indices = @transform_0, window_bounds = array<i64: 8, 32>}, {pipeline_mode = #tpu.pipeline_mode<synchronous>, transform_indices = @transform_1, window_bounds = array<i64: 32, 175>}, {pipeline_mode = #tpu.pipeline_mode<synchronous>, transform_indices = @transform_2, window_bounds = array<i64: 175, 128>}, {transform_indices = @transform_3, window_bounds = array<i64: 32, 182>}, {transform_indices = @transform_4, window_bounds = array<i64: 32, 7>}]} {
    %c0 = arith.constant 0 : index
    %c175 = arith.constant 175 : index
    %0 = vector.load %arg4[%c0, %c175] : memref<32x182xf32, #tpu.memory_space<vmem>>, vector<32x7xf32>
    %1 = vector.extract_strided_slice %0 {offsets = [0, 0], sizes = [32, 1], strides = [1, 1]} : vector<32x7xf32> to vector<32x1xf32>
    %c3 = arith.constant 3 : index
    %c0_0 = arith.constant 0 : index
    %2 = vector.load %arg1[%c3, %c0_0] : memref<8x32xf32, #tpu.memory_space<vmem>>, vector<1x2xf32>
    %3 = vector.broadcast %1 : vector<32x1xf32> to vector<32x2xf32>
    %4 = vector.broadcast %2 : vector<1x2xf32> to vector<32x2xf32>
    %5 = arith.subf %3, %4 : vector<32x2xf32>
    %6 = math.cos %5 : vector<32x2xf32>
    %7 = vector.extract_strided_slice %6 {offsets = [0, 0], sizes = [32, 1], strides = [1, 1]} : vector<32x2xf32> to vector<32x1xf32>
    %8 = vector.extract_strided_slice %6 {offsets = [0, 1], sizes = [32, 1], strides = [1, 1]} : vector<32x2xf32> to vector<32x1xf32>
    %9 = vector.extract_strided_slice %0 {offsets = [0, 5], sizes = [32, 2], strides = [1, 1]} : vector<32x7xf32> to vector<32x2xf32>
    %cst = arith.constant 5.000000e-01 : f32
    %10 = vector.broadcast %cst : f32 to vector<32x2xf32>
    %11 = arith.mulf %9, %10 : vector<32x2xf32>
    %12 = vector.extract_strided_slice %0 {offsets = [0, 3], sizes = [32, 2], strides = [1, 1]} : vector<32x7xf32> to vector<32x2xf32>
    %13 = arith.addf %11, %12 : vector<32x2xf32>
    %14 = vector.extract_strided_slice %0 {offsets = [0, 1], sizes = [32, 2], strides = [1, 1]} : vector<32x7xf32> to vector<32x2xf32>
    %cst_1 = arith.constant 1.000000e+00 : f32
    %15 = vector.broadcast %cst_1 : f32 to vector<32x2xf32>
    %16 = arith.addf %14, %15 : vector<32x2xf32>
    %17 = vector.extract_strided_slice %13 {offsets = [0, 0], sizes = [32, 1], strides = [1, 1]} : vector<32x2xf32> to vector<32x1xf32>
    %18 = vector.extract_strided_slice %13 {offsets = [0, 1], sizes = [32, 1], strides = [1, 1]} : vector<32x2xf32> to vector<32x1xf32>
    %19 = arith.mulf %7, %17 : vector<32x1xf32>
    %20 = arith.mulf %8, %18 : vector<32x1xf32>
    %21 = arith.subf %19, %20 : vector<32x1xf32>
    %22 = arith.mulf %8, %21 : vector<32x1xf32>
    %23 = arith.mulf %7, %18 : vector<32x1xf32>
    %24 = arith.addf %22, %23 : vector<32x1xf32>
    %25 = vector.extract_strided_slice %16 {offsets = [0, 0], sizes = [32, 1], strides = [1, 1]} : vector<32x2xf32> to vector<32x1xf32>
    %26 = arith.mulf %25, %21 : vector<32x1xf32>
    %27 = vector.extract_strided_slice %16 {offsets = [0, 1], sizes = [32, 1], strides = [1, 1]} : vector<32x2xf32> to vector<32x1xf32>
    %28 = arith.mulf %27, %24 : vector<32x1xf32>
    %c0_2 = arith.constant 0 : index
    %c0_3 = arith.constant 0 : index
    %29 = vector.load %arg1[%c0_2, %c0_3] : memref<8x32xf32, #tpu.memory_space<vmem>>, vector<1x32xf32>
    %c1 = arith.constant 1 : index
    %c0_4 = arith.constant 0 : index
    %30 = vector.load %arg1[%c1, %c0_4] : memref<8x32xf32, #tpu.memory_space<vmem>>, vector<1x32xf32>
    %c2 = arith.constant 2 : index
    %c0_5 = arith.constant 0 : index
    %31 = vector.load %arg1[%c2, %c0_5] : memref<8x32xf32, #tpu.memory_space<vmem>>, vector<1x32xf32>
    %32 = vector.broadcast %26 : vector<32x1xf32> to vector<32x32xf32>
    %33 = vector.broadcast %29 : vector<1x32xf32> to vector<32x32xf32>
    %34 = arith.mulf %32, %33 : vector<32x32xf32>
    %35 = vector.broadcast %28 : vector<32x1xf32> to vector<32x32xf32>
    %36 = vector.broadcast %30 : vector<1x32xf32> to vector<32x32xf32>
    %37 = arith.mulf %35, %36 : vector<32x32xf32>
    %38 = arith.addf %34, %37 : vector<32x32xf32>
    %39 = vector.broadcast %31 : vector<1x32xf32> to vector<32x32xf32>
    %40 = arith.addf %38, %39 : vector<32x32xf32>
    %41 = math.cos %40 : vector<32x32xf32>
    %c0_6 = arith.constant 0 : index
    %c0_7 = arith.constant 0 : index
    %42 = vector.load %arg2[%c0_6, %c0_7] : memref<32x175xf32, #tpu.memory_space<vmem>>, vector<32x175xf32>
    %cst_8 = arith.constant dense<0.000000e+00> : vector<32x175xf32>
    %43 = tpu.matmul %41, %42, %cst_8 {dimension_numbers = #tpu.dot_dimension_numbers<[1], [0], [0], [1], [0, 0, 1, 1], [], []>, precision = #tpu.contract_precision<fp32>} : vector<32x32xf32>, vector<32x175xf32>, vector<32x175xf32> -> vector<32x175xf32>
    %c0_9 = arith.constant 0 : index
    %c0_10 = arith.constant 0 : index
    %44 = vector.load %arg4[%c0_9, %c0_10] : memref<32x182xf32, #tpu.memory_space<vmem>>, vector<32x175xf32>
    %45 = arith.mulf %44, %43 : vector<32x175xf32>
    %c0_11 = arith.constant 0 : index
    %c0_12 = arith.constant 0 : index
    %46 = vector.load %arg3[%c0_11, %c0_12] : memref<175x128xf32, #tpu.memory_space<vmem>>, vector<175x128xf32>
    %cst_13 = arith.constant dense<0.000000e+00> : vector<32x128xf32>
    %47 = tpu.matmul %45, %46, %cst_13 {dimension_numbers = #tpu.dot_dimension_numbers<[1], [0], [0], [1], [0, 0, 1, 1], [], []>, precision = #tpu.contract_precision<fp32>} : vector<32x175xf32>, vector<175x128xf32>, vector<32x128xf32> -> vector<32x128xf32>
    %48 = vector.extract_strided_slice %47 {offsets = [0, 0], sizes = [32, 7], strides = [1, 1]} : vector<32x128xf32> to vector<32x7xf32>
    %c0_14 = arith.constant 0 : index
    %c0_15 = arith.constant 0 : index
    %49 = vector.load %arg5[%c0_14, %c0_15] : memref<32x7xf32, #tpu.memory_space<vmem>>, vector<32x7xf32>
    tpu.vector_store %arg5[%c0_14, %c0_15], %48 {strides = array<i32>} : memref<32x7xf32, #tpu.memory_space<vmem>>, vector<32x7xf32>,
    return
  }
  func.func @transform_0(%arg0: i32) -> (i32, i32) {
    %c0_i32 = arith.constant 0 : i32
    %c0_i32_0 = arith.constant 0 : i32
    %c0_i32_1 = arith.constant 0 : i32
    return %c0_i32, %c0_i32_0 : i32, i32
  }
  func.func @transform_1(%arg0: i32) -> (i32, i32) {
    %c0_i32 = arith.constant 0 : i32
    %c0_i32_0 = arith.constant 0 : i32
    %c0_i32_1 = arith.constant 0 : i32
    return %c0_i32, %c0_i32_0 : i32, i32
  }
  func.func @transform_2(%arg0: i32) -> (i32, i32) {
    %c0_i32 = arith.constant 0 : i32
    %c0_i32_0 = arith.constant 0 : i32
    %c0_i32_1 = arith.constant 0 : i32
    return %c0_i32, %c0_i32_0 : i32, i32
  }
  func.func @transform_3(%arg0: i32) -> (i32, i32) {
    %c0_i32 = arith.constant 0 : i32
    %c0_i32_0 = arith.constant 0 : i32
    return %arg0, %c0_i32 : i32, i32
  }
  func.func @transform_4(%arg0: i32) -> (i32, i32) {
    %c0_i32 = arith.constant 0 : i32
    %c0_i32_0 = arith.constant 0 : i32
    return %arg0, %c0_i32 : i32, i32
  }
}

</mosaic_0001>

<llo_original>
// kernel: tpu_custom_call.1
$region0: #{tpu_custom_call.1}
  #allocation0 [shape = 'u32[]', space=smem, size = 0x4, offset = 0x4, fixed_abs, tag = 'smem constant byte address 0x4 - core index']
  #allocation1 [shape = 'u32[144,128]{1,0:T(1,128)}', space=vmem, size = 0x12000, scoped, tag = 'internal scratch']
  %s0 = inlined_call_operand.vmem [shape: f32[8,32], index: 0, kind: input, shape index: {}]
  %s1 = inlined_call_operand.vmem [shape: f32[32,175], index: 1, kind: input, shape index: {}]
  %s2 = inlined_call_operand.vmem [shape: f32[175,128], index: 2, kind: input, shape index: {}]
  %s3 = inlined_call_operand.vmem [shape: f32[128,182], index: 3, kind: input, shape index: {}]
  %s4 = inlined_call_operand.vmem [shape: f32[128,7], index: 4, kind: output, shape index: {}]
  %s5 = sld [smem:[#allocation0]]
  $region49: #{tpu_custom_call.1} parent=0
    _
  %s7 = ssub.s32 1, %s5
  %s8 = scalar_select 0, %s7, %s5
  loop: start=0, step=1, limit=6
  $region2: #{tpu_custom_call.1} parent=0 // loop_pre_header
    _
  $region3: #{tpu_custom_call.1} parent=0 // loop_header
    %s10 = sphi 0, %s14
    %p11 = scmp.ge.s32.totalorder %s10, 6
    %s18 = sphi 0, %s18
    %s20 = sphi 0, %s18
    %s21 = sphi 0, %s20
    %s35 = sphi 0, %s21
    %s39 = sphi 0, %s39
    %s41 = sphi 0, %s39
    %s42 = sphi 0, %s41
    %s56 = sphi 0, %s42
    %s60 = sphi 0, %s60
    %s62 = sphi 0, %s60
    %s63 = sphi 0, %s62
    %s77 = sphi 0, %s63
    %s83 = sphi 0, %s85
    %s86 = sphi 0, %s83
    %s87 = sphi 0, %s86
    %s103 = sphi 0, %s87
    %s109 = sphi 0, %s111
    %s112 = sphi 0, %s109
    %s113 = sphi 0, %s112
    %s129 = sphi 0, %s113
  $region4: #{tpu_custom_call.1} parent=0 // loop_header_branch
    %13 = sbr.rel (%p11) target = $region8
  $region5: #{tpu_custom_call.1} parent=0 // loop_body
    %s15 = ssub.s32 %s10, 1
    %s16 = ssub.s32 %s10, 2
    %s17 = sadd.s32 %s10, 1
    %s19 = sadd.s32 %s18, 1
    %p22 = scmp.eq.s32.totalorder %s10, 3
    %p23 = scmp.ne.s32.totalorder %s18, %s20
    %p24 = scmp.eq.s32.totalorder %s10, 0
    %p25 = por %p23, %p24
    %p26 = scmp.ne.s32.totalorder %s18, %s20
    %p27 = scmp.eq.s32.totalorder %s15, 3
    %p28 = por %p26, %p27
    %p29 = scmp.ne.s32.totalorder %s20, %s21
    %p30 = scmp.eq.s32.totalorder %s15, 0
    %p31 = por %p29, %p30
    %p32 = scmp.ne.s32.totalorder %s20, %s21
    %p33 = scmp.eq.s32.totalorder %s16, 3
    %p34 = por %p32, %p33
    %p36 = scmp.ne.s32.totalorder %s21, %s35
    %p37 = scmp.eq.s32.totalorder %s16, 0
    %p38 = por %p36, %p37
    %s40 = sadd.s32 %s39, 1
    %p43 = scmp.eq.s32.totalorder %s10, 3
    %p44 = scmp.ne.s32.totalorder %s39, %s41
    %p45 = scmp.eq.s32.totalorder %s10, 0
    %p46 = por %p44, %p45
    %p47 = scmp.ne.s32.totalorder %s39, %s41
    %p48 = scmp.eq.s32.totalorder %s15, 3
    %p49 = por %p47, %p48
    %p50 = scmp.ne.s32.totalorder %s41, %s42
    %p51 = scmp.eq.s32.totalorder %s15, 0
    %p52 = por %p50, %p51
    %p53 = scmp.ne.s32.totalorder %s41, %s42
    %p54 = scmp.eq.s32.totalorder %s16, 3
    %p55 = por %p53, %p54
    %p57 = scmp.ne.s32.totalorder %s42, %s56
    %p58 = scmp.eq.s32.totalorder %s16, 0
    %p59 = por %p57, %p58
    %s61 = sadd.s32 %s60, 1
    %p64 = scmp.eq.s32.totalorder %s10, 3
    %p65 = scmp.ne.s32.totalorder %s60, %s62
    %p66 = scmp.eq.s32.totalorder %s10, 0
    %p67 = por %p65, %p66
    %p68 = scmp.ne.s32.totalorder %s60, %s62
    %p69 = scmp.eq.s32.totalorder %s15, 3
    %p70 = por %p68, %p69
    %p71 = scmp.ne.s32.totalorder %s62, %s63
    %p72 = scmp.eq.s32.totalorder %s15, 0
    %p73 = por %p71, %p72
    %p74 = scmp.ne.s32.totalorder %s62, %s63
    %p75 = scmp.eq.s32.totalorder %s16, 3
    %p76 = por %p74, %p75
    %p78 = scmp.ne.s32.totalorder %s63, %s77
    %p79 = scmp.eq.s32.totalorder %s16, 0
    %p80 = por %p78, %p79
    %s81 = ssub.s32 %s10, %s17
    %p82 = scmp.eq.s32.totalorder %s81, 0
    %s84 = sadd.s32 %s83, 1
    %s85 = scalar_select %p82, %s83, %s84
    %p88 = pneg %p82
    %p89 = scmp.eq.s32.totalorder %s10, 3
    %p90 = por %p88, %p89
    %p91 = scmp.ne.s32.totalorder %s83, %s86
    %p92 = scmp.eq.s32.totalorder %s10, 0
    %p93 = por %p91, %p92
    %p94 = scmp.ne.s32.totalorder %s83, %s86
    %p95 = scmp.eq.s32.totalorder %s15, 3
    %p96 = por %p94, %p95
    %p97 = scmp.ne.s32.totalorder %s86, %s87
    %p98 = scmp.eq.s32.totalorder %s15, 0
    %p99 = por %p97, %p98
    %p100 = scmp.ne.s32.totalorder %s86, %s87
    %p101 = scmp.eq.s32.totalorder %s16, 3
    %p102 = por %p100, %p101
    %p104 = scmp.ne.s32.totalorder %s87, %s103
    %p105 = scmp.eq.s32.totalorder %s16, 0
    %p106 = por %p104, %p105
    %s107 = ssub.s32 %s10, %s17
    %p108 = scmp.eq.s32.totalorder %s107, 0
    %s110 = sadd.s32 %s109, 1
    %s111 = scalar_select %p108, %s109, %s110
    %p114 = pneg %p108
    %p115 = scmp.eq.s32.totalorder %s10, 3
    %p116 = por %p114, %p115
    %p117 = scmp.ne.s32.totalorder %s109, %s112
    %p118 = scmp.eq.s32.totalorder %s10, 0
    %p119 = por %p117, %p118
    %p120 = scmp.ne.s32.totalorder %s109, %s112
    %p121 = scmp.eq.s32.totalorder %s15, 3
    %p122 = por %p120, %p121
    %p123 = scmp.ne.s32.totalorder %s112, %s113
    %p124 = scmp.eq.s32.totalorder %s15, 0
    %p125 = por %p123, %p124
    %p126 = scmp.ne.s32.totalorder %s112, %s113
    %p127 = scmp.eq.s32.totalorder %s16, 3
    %p128 = por %p126, %p127
    %p130 = scmp.ne.s32.totalorder %s113, %s129
    %p131 = scmp.eq.s32.totalorder %s16, 0
    %p132 = por %p130, %p131
    %p133 = scmp.le.s32.totalorder 1, %s10
    %p134 = scmp.lt.s32.totalorder %s10, 5
    %p135 = pnand %p133, %p134
    %p136 = pneg %p135
    // Predicated region
    $region9: #{tpu_custom_call.1} parent=5 // pred_check
      _
    $region10: #{tpu_custom_call.1} parent=5 // pred_check_branch
      %138 = sbr.rel (%p135) target = $region12
    $region11: #{tpu_custom_call.1} parent=5 // pred_region
      %s139 = ssub.s32 %s10, 1
      // Predicated region
      $region13: #{tpu_custom_call.1} parent=11 // pred_check
        %p140 = pneg %p31
      $region14: #{tpu_custom_call.1} parent=11 // pred_check_branch
        %142 = sbr.rel (%p140) target = $region16
      $region15: #{tpu_custom_call.1} parent=11 // pred_region
        _
      $region16: #{tpu_custom_call.1} parent=11 // pred_fallthru
        _
      // Predicated region
      $region17: #{tpu_custom_call.1} parent=11 // pred_check
        %p143 = pneg %p52
      $region18: #{tpu_custom_call.1} parent=11 // pred_check_branch
        %145 = sbr.rel (%p143) target = $region20
      $region19: #{tpu_custom_call.1} parent=11 // pred_region
        _
      $region20: #{tpu_custom_call.1} parent=11 // pred_fallthru
        _
      // Predicated region
      $region21: #{tpu_custom_call.1} parent=11 // pred_check
        %p146 = pneg %p73
      $region22: #{tpu_custom_call.1} parent=11 // pred_check_branch
        %148 = sbr.rel (%p146) target = $region24
      $region23: #{tpu_custom_call.1} parent=11 // pred_region
        _
      $region24: #{tpu_custom_call.1} parent=11 // pred_fallthru
        _
    $region12: #{tpu_custom_call.1} parent=5 // pred_fallthru
      _
    %p149 = scmp.lt.s32.totalorder %s10, 4
    // Predicated region
    $region25: #{tpu_custom_call.1} parent=5 // pred_check
      %p150 = pneg %p149
    $region26: #{tpu_custom_call.1} parent=5 // pred_check_branch
      %152 = sbr.rel (%p150) target = $region28
    $region27: #{tpu_custom_call.1} parent=5 // pred_region
      // Predicated region
      $region29: #{tpu_custom_call.1} parent=27 // pred_check
        %p153 = pneg %p93
      $region30: #{tpu_custom_call.1} parent=27 // pred_check_branch
        %155 = sbr.rel (%p153) target = $region32
      $region31: #{tpu_custom_call.1} parent=27 // pred_region
        %s156 = smul.u32 4, %s10
        %p157 = scmp.lt.s32.totalorder %s156, 15
        %s158 = scalar_select %p157, %s156, 15
        %s159 = smul.addr %s158, 2
        %s160 = smul.addr %s159, 8
        %s161 = scalar_lea.vmem %s3, %s160
        %s162 = smul.u32 4, %s10
      $region32: #{tpu_custom_call.1} parent=27 // pred_fallthru
        _
    $region28: #{tpu_custom_call.1} parent=5 // pred_fallthru
      _
    %p163 = scmp.le.s32.totalorder 1, %s10
    %p164 = scmp.lt.s32.totalorder %s10, 5
    %p165 = pnand %p163, %p164
    %p166 = pneg %p165
    // Predicated region
    $region33: #{tpu_custom_call.1} parent=5 // pred_check
      _
    $region34: #{tpu_custom_call.1} parent=5 // pred_check_branch
      %168 = sbr.rel (%p165) target = $region36
    $region35: #{tpu_custom_call.1} parent=5 // pred_region
      %s169 = ssub.s32 %s10, 1
      %p170 = pneg %p31
      %p171 = pneg %p28
      %p172 = pneg %p52
      %p173 = pneg %p49
      %p174 = pneg %p73
      %p175 = pneg %p70
      %s176 = smul.u32 4, %s15
      %p177 = scmp.lt.s32.totalorder %s176, 15
      %s178 = scalar_select %p177, %s176, 15
      %s179 = smul.addr %s178, 2
      %s180 = smul.addr %s179, 8
      %s181 = scalar_lea.vmem %s3, %s180
      %p182 = pneg %p99
      %p183 = pneg %p96
      %p184 = pneg %p125
      %p185 = pneg %p122
      %s186 = smul.u32 4, %s15
      %p187 = scmp.lt.s32.totalorder %s186, 15
      %s188 = scalar_select %p187, %s186, 15
      %s189 = smul.addr %s188, 8
      %s190 = scalar_lea.vmem %s4, %s189
      %s191 = smul.u32 4, %s15
      %p192 = scmp.lt.s32.totalorder %s191, 15
      %s193 = scalar_select %p192, %s191, 15
      %s194 = smul.addr %s193, 2
      %s195 = smul.addr %s194, 8
      %s196 = scalar_lea.vmem %s3, %s195
      %s197 = smul.u32 4, %s15
      %s198 = smul.u32 4, %s15
      %p199 = scmp.lt.s32.totalorder %s198, 15
      %s200 = scalar_select %p199, %s198, 15
      %s201 = smul.addr %s200, 8
      %s202 = scalar_lea.vmem %s4, %s201
      %s203 = smul.u32 4, %s15
      %v204 = vld [vmem:[%s196 + $0x8] sm:$0xff]
      %v205 = vld [vmem:[%s196 + $0x18] sm:$0xff]
      %v206 = vld [vmem:[%s196 + $0x28] sm:$0xff]
      %v207 = vld [vmem:[%s196 + $0x38] sm:$0xff]
      %v208 = vld [vmem:[%s0 + $0x3] sm:$0x1]
      %210 = vset.pattern.permute.xlu0 47
      %211 = vperm.xlu0 %210, %v204
      %v212 = vpop.permute.xlu0 %211
      %215 = vset.pattern.permute.xlu0 47
      %216 = vperm.xlu0 %215, %v205
      %v217 = vpop.permute.xlu0 %216
      %220 = vset.pattern.permute.xlu0 47
      %221 = vperm.xlu0 %220, %v206
      %v222 = vpop.permute.xlu0 %221
      %225 = vset.pattern.permute.xlu0 47
      %226 = vperm.xlu0 %225, %v207
      %v227 = vpop.permute.xlu0 %226
      %v229 = vlaneseq
      %v230 = vshrl.u32 %v229, 7
      %v231 = vsub.s32 0, %v230
      %v232 = vrot.slane %v208, %v231
      %v233 = vsub.f32 %v212, %v232
      %v234 = vsub.f32 %v217, %v232
      %v235 = vsub.f32 %v222, %v232
      %v236 = vsub.f32 %v227, %v232
      %v237 = vand.u32 2147483647, %v233
      %vm238 = vcmp.le.f32.partialorder %v237, 0.7853982
      %vm239 = vcmp.lt.s32.totalorder %v233, 0
      %v240 = vand.u32 %v233, 2139095040
      %v241 = vshrl.u32 %v240, 23
      %v242 = vsub.s32 %v241, 127
      %v243 = vand.u32 2147483647, %v233
      %v244 = vand.u32 %v243, 8388607
      %v245 = vor.u32 %v244, 8388608
      %v246 = vsub.s32 0, %v245
      %v247 = vadd.s32 %v242, 1
      %vm248 = vcmp.gt.s32.totalorder %v247, 0
      %v249 = vsel %vm248, %v247, 0
      %v250 = vshrl.u32 %v249, 5
      %v251 = vand.u32 %v249, 31
      %v252 = vsub.s32 32, %v251
      %v253 = vshrl.u32 683565275, %v252
      %v254 = vshll.u32 683565275, %v251
      %v255 = vshrl.u32 2475754826, %v252
      %v256 = vor.u32 %v254, %v255
      %v257 = vshll.u32 2475754826, %v251
      %v258 = vshrl.u32 2131351028, %v252
      %v259 = vor.u32 %v257, %v258
      %v260 = vshll.u32 2131351028, %v251
      %v261 = vshrl.u32 2102212464, %v252
      %v262 = vor.u32 %v260, %v261
      %v263 = vshll.u32 2102212464, %v251
      %v264 = vshrl.u32 920167782, %v252
      %v265 = vor.u32 %v263, %v264
      %v266 = vshll.u32 920167782, %v251
      %v267 = vshrl.u32 1326507024, %v252
      %v268 = vor.u32 %v266, %v267
      %vm269 = vcmp.lt.s32.totalorder %v250, 1
      %vm270 = vcmp.lt.s32.totalorder %v250, 2
      %vm271 = vcmp.lt.s32.totalorder %v250, 3
      %vm272 = vcmp.lt.s32.totalorder %v250, 4
      %v273 = vsel %vm269, %v253, %v256
      %v274 = vsel %vm272, %v262, 2102212464
      %v275 = vsel %vm271, %v259, %v274
      %v276 = vsel %vm270, %v273, %v275
      %v277 = vsel %vm269, %v256, %v259
      %v278 = vsel %vm272, %v265, 920167782
      %v279 = vsel %vm271, %v262, %v278
      %v280 = vsel %vm270, %v277, %v279
      %v281 = vsel %vm269, %v259, %v262
      %v282 = vsel %vm272, %v268, 1326507024
      %v283 = vsel %vm271, %v265, %v282
      %v284 = vsel %vm270, %v281, %v283
      %v285 = vshll.u32 %v245, 8
      %v286 = vmul.u32.u64.compose %v285, %v284
      %v287 = vextract.low.u32 %v286
      %v288 = vextract.high.u32 %v286
      %v289 = vmul.u32.u64.compose %v285, %v280
      %v290 = vextract.low.u32 %v289
      %v291 = vextract.high.u32 %v289
      %v292 = vmul.u32 %v285, %v276
      %v293 = vadd.s32 %v288, %v290
      %vm294 = vc.u32 %v288, %v290
      %v295 = vadd.s32 %v291, 1
      %v296 = vsel %vm294, %v295, %v291
      %v297 = vadd.s32 %v292, %v296
      %v298 = vadd.s32 %v297, 536870912
      %v299 = vshrl.u32 %v298, 30
      %v300 = vshll.u32 %v299, 30
      %v301 = vsub.s32 %v297, %v300
      %vm302 = vcmp.lt.s32.totalorder %v301, 0
      %v303 = vsub.s32 0, %v301
      %v304 = vsel %vm302, %v303, %v301
      %v305 = vclz %v304
      %v306 = vsub.s32 %v305, 2
      %vm307 = vcmp.gt.s32.totalorder 0, %v306
      %v308 = vsel %vm307, 0, %v306
      %v309 = vsub.s32 32, %v308
      %v310 = vshll.u32 %v301, %v308
      %v311 = vshrl.u32 %v293, %v309
      %v312 = vor.u32 %v310, %v311
      %v313 = vsub.s32 4294967266, %v308
      %v314 = vadd.s32 %v313, 127
      %v315 = vshll.u32 %v314, 23
      %v316 = vor.u32 4788187, %v315
      %v317 = vand.u32 2147483647, %v316
      %v319 = vcvt.s32.f32 %v312
      %v320 = vmul.f32 %v319, %v317
      %v321 = vxor.u32 %v320, 2147483648
      %v322 = vsel %vm239, %v321, %v320
      %v323 = vsub.s32 4, %v299
      %v324 = vsel %vm239, %v323, %v299
      %v325 = vsel %vm238, %v233, %v322
      %v326 = vsel %vm238, 0, %v324
      %v327 = vcosq.f32.pop %v325
      %v328 = vsinq.f32.pop %v325
      %vm329 = vweird.f32 %v233
      %v330 = vand.u32 %v326, 3
      %vm331 = vcmp.lt.s32.totalorder %v330, 2
      %vm332 = vcmp.eq.s32.totalorder %v330, 0
      %v333 = vxor.u32 %v328, 2147483648
      %v334 = vsel %vm332, %v327, %v333
      %vm335 = vcmp.eq.s32.totalorder %v330, 2
      %v336 = vxor.u32 %v327, 2147483648
      %v337 = vsel %vm335, %v336, %v328
      %v338 = vsel %vm331, %v334, %v337
      %v339 = vsel %vm329, nan, %v338
      %v340 = vand.u32 2147483647, %v234
      %vm341 = vcmp.le.f32.partialorder %v340, 0.7853982
      %vm342 = vcmp.lt.s32.totalorder %v234, 0
      %v343 = vand.u32 %v234, 2139095040
      %v344 = vshrl.u32 %v343, 23
      %v345 = vsub.s32 %v344, 127
      %v346 = vand.u32 2147483647, %v234
      %v347 = vand.u32 %v346, 8388607
      %v348 = vor.u32 %v347, 8388608
      %v349 = vsub.s32 0, %v348
      %v350 = vadd.s32 %v345, 1
      %vm351 = vcmp.gt.s32.totalorder %v350, 0
      %v352 = vsel %vm351, %v350, 0
      %v353 = vshrl.u32 %v352, 5
      %v354 = vand.u32 %v352, 31
      %v355 = vsub.s32 32, %v354
      %v356 = vshrl.u32 683565275, %v355
      %v357 = vshll.u32 683565275, %v354
      %v358 = vshrl.u32 2475754826, %v355
      %v359 = vor.u32 %v357, %v358
      %v360 = vshll.u32 2475754826, %v354
      %v361 = vshrl.u32 2131351028, %v355
      %v362 = vor.u32 %v360, %v361
      %v363 = vshll.u32 2131351028, %v354
      %v364 = vshrl.u32 2102212464, %v355
      %v365 = vor.u32 %v363, %v364
      %v366 = vshll.u32 2102212464, %v354
      %v367 = vshrl.u32 920167782, %v355
      %v368 = vor.u32 %v366, %v367
      %v369 = vshll.u32 920167782, %v354
      %v370 = vshrl.u32 1326507024, %v355
      %v371 = vor.u32 %v369, %v370
      %vm372 = vcmp.lt.s32.totalorder %v353, 1
      %vm373 = vcmp.lt.s32.totalorder %v353, 2
      %vm374 = vcmp.lt.s32.totalorder %v353, 3
      %vm375 = vcmp.lt.s32.totalorder %v353, 4
      %v376 = vsel %vm372, %v356, %v359
      %v377 = vsel %vm375, %v365, 2102212464
      %v378 = vsel %vm374, %v362, %v377
      %v379 = vsel %vm373, %v376, %v378
      %v380 = vsel %vm372, %v359, %v362
      %v381 = vsel %vm375, %v368, 920167782
      %v382 = vsel %vm374, %v365, %v381
      %v383 = vsel %vm373, %v380, %v382
      %v384 = vsel %vm372, %v362, %v365
      %v385 = vsel %vm375, %v371, 1326507024
      %v386 = vsel %vm374, %v368, %v385
      %v387 = vsel %vm373, %v384, %v386
      %v388 = vshll.u32 %v348, 8
      %v389 = vmul.u32.u64.compose %v388, %v387
      %v390 = vextract.low.u32 %v389
      %v391 = vextract.high.u32 %v389
      %v392 = vmul.u32.u64.compose %v388, %v383
      %v393 = vextract.low.u32 %v392
      %v394 = vextract.high.u32 %v392
      %v395 = vmul.u32 %v388, %v379
      %v396 = vadd.s32 %v391, %v393
      %vm397 = vc.u32 %v391, %v393
      %v398 = vadd.s32 %v394, 1
      %v399 = vsel %vm397, %v398, %v394
      %v400 = vadd.s32 %v395, %v399
      %v401 = vadd.s32 %v400, 536870912
      %v402 = vshrl.u32 %v401, 30
      %v403 = vshll.u32 %v402, 30
      %v404 = vsub.s32 %v400, %v403
      %vm405 = vcmp.lt.s32.totalorder %v404, 0
      %v406 = vsub.s32 0, %v404
      %v407 = vsel %vm405, %v406, %v404
      %v408 = vclz %v407
      %v409 = vsub.s32 %v408, 2
      %vm410 = vcmp.gt.s32.totalorder 0, %v409
      %v411 = vsel %vm410, 0, %v409
      %v412 = vsub.s32 32, %v411
      %v413 = vshll.u32 %v404, %v411
      %v414 = vshrl.u32 %v396, %v412
      %v415 = vor.u32 %v413, %v414
      %v416 = vsub.s32 4294967266, %v411
      %v417 = vadd.s32 %v416, 127
      %v418 = vshll.u32 %v417, 23
      %v419 = vor.u32 4788187, %v418
      %v420 = vand.u32 2147483647, %v419
      %v422 = vcvt.s32.f32 %v415
      %v423 = vmul.f32 %v422, %v420
      %v424 = vxor.u32 %v423, 2147483648
      %v425 = vsel %vm342, %v424, %v423
      %v426 = vsub.s32 4, %v402
      %v427 = vsel %vm342, %v426, %v402
      %v428 = vsel %vm341, %v234, %v425
      %v429 = vsel %vm341, 0, %v427
      %v430 = vcosq.f32.pop %v428
      %v431 = vsinq.f32.pop %v428
      %vm432 = vweird.f32 %v234
      %v433 = vand.u32 %v429, 3
      %vm434 = vcmp.lt.s32.totalorder %v433, 2
      %vm435 = vcmp.eq.s32.totalorder %v433, 0
      %v436 = vxor.u32 %v431, 2147483648
      %v437 = vsel %vm435, %v430, %v436
      %vm438 = vcmp.eq.s32.totalorder %v433, 2
      %v439 = vxor.u32 %v430, 2147483648
      %v440 = vsel %vm438, %v439, %v431
      %v441 = vsel %vm434, %v437, %v440
      %v442 = vsel %vm432, nan, %v441
      %v443 = vand.u32 2147483647, %v235
      %vm444 = vcmp.le.f32.partialorder %v443, 0.7853982
      %vm445 = vcmp.lt.s32.totalorder %v235, 0
      %v446 = vand.u32 %v235, 2139095040
      %v447 = vshrl.u32 %v446, 23
      %v448 = vsub.s32 %v447, 127
      %v449 = vand.u32 2147483647, %v235
      %v450 = vand.u32 %v449, 8388607
      %v451 = vor.u32 %v450, 8388608
      %v452 = vsub.s32 0, %v451
      %v453 = vadd.s32 %v448, 1
      %vm454 = vcmp.gt.s32.totalorder %v453, 0
      %v455 = vsel %vm454, %v453, 0
      %v456 = vshrl.u32 %v455, 5
      %v457 = vand.u32 %v455, 31
      %v458 = vsub.s32 32, %v457
      %v459 = vshrl.u32 683565275, %v458
      %v460 = vshll.u32 683565275, %v457
      %v461 = vshrl.u32 2475754826, %v458
      %v462 = vor.u32 %v460, %v461
      %v463 = vshll.u32 2475754826, %v457
      %v464 = vshrl.u32 2131351028, %v458
      %v465 = vor.u32 %v463, %v464
      %v466 = vshll.u32 2131351028, %v457
      %v467 = vshrl.u32 2102212464, %v458
      %v468 = vor.u32 %v466, %v467
      %v469 = vshll.u32 2102212464, %v457
      %v470 = vshrl.u32 920167782, %v458
      %v471 = vor.u32 %v469, %v470
      %v472 = vshll.u32 920167782, %v457
      %v473 = vshrl.u32 1326507024, %v458
      %v474 = vor.u32 %v472, %v473
      %vm475 = vcmp.lt.s32.totalorder %v456, 1
      %vm476 = vcmp.lt.s32.totalorder %v456, 2
      %vm477 = vcmp.lt.s32.totalorder %v456, 3
      %vm478 = vcmp.lt.s32.totalorder %v456, 4
      %v479 = vsel %vm475, %v459, %v462
      %v480 = vsel %vm478, %v468, 2102212464
      %v481 = vsel %vm477, %v465, %v480
      %v482 = vsel %vm476, %v479, %v481
      %v483 = vsel %vm475, %v462, %v465
      %v484 = vsel %vm478, %v471, 920167782
      %v485 = vsel %vm477, %v468, %v484
      %v486 = vsel %vm476, %v483, %v485
      %v487 = vsel %vm475, %v465, %v468
      %v488 = vsel %vm478, %v474, 1326507024
      %v489 = vsel %vm477, %v471, %v488
      %v490 = vsel %vm476, %v487, %v489
      %v491 = vshll.u32 %v451, 8
      %v492 = vmul.u32.u64.compose %v491, %v490
      %v493 = vextract.low.u32 %v492
      %v494 = vextract.high.u32 %v492
      %v495 = vmul.u32.u64.compose %v491, %v486
      %v496 = vextract.low.u32 %v495
      %v497 = vextract.high.u32 %v495
      %v498 = vmul.u32 %v491, %v482
      %v499 = vadd.s32 %v494, %v496
      %vm500 = vc.u32 %v494, %v496
      %v501 = vadd.s32 %v497, 1
      %v502 = vsel %vm500, %v501, %v497
      %v503 = vadd.s32 %v498, %v502
      %v504 = vadd.s32 %v503, 536870912
      %v505 = vshrl.u32 %v504, 30
      %v506 = vshll.u32 %v505, 30
      %v507 = vsub.s32 %v503, %v506
      %vm508 = vcmp.lt.s32.totalorder %v507, 0
      %v509 = vsub.s32 0, %v507
      %v510 = vsel %vm508, %v509, %v507
      %v511 = vclz %v510
      %v512 = vsub.s32 %v511, 2
      %vm513 = vcmp.gt.s32.totalorder 0, %v512
      %v514 = vsel %vm513, 0, %v512
      %v515 = vsub.s32 32, %v514
      %v516 = vshll.u32 %v507, %v514
      %v517 = vshrl.u32 %v499, %v515
      %v518 = vor.u32 %v516, %v517
      %v519 = vsub.s32 4294967266, %v514
      %v520 = vadd.s32 %v519, 127
      %v521 = vshll.u32 %v520, 23
      %v522 = vor.u32 4788187, %v521
      %v523 = vand.u32 2147483647, %v522
      %v525 = vcvt.s32.f32 %v518
      %v526 = vmul.f32 %v525, %v523
      %v527 = vxor.u32 %v526, 2147483648
      %v528 = vsel %vm445, %v527, %v526
      %v529 = vsub.s32 4, %v505
      %v530 = vsel %vm445, %v529, %v505
      %v531 = vsel %vm444, %v235, %v528
      %v532 = vsel %vm444, 0, %v530
      %v533 = vcosq.f32.pop %v531
      %v534 = vsinq.f32.pop %v531
      %vm535 = vweird.f32 %v235
      %v536 = vand.u32 %v532, 3
      %vm537 = vcmp.lt.s32.totalorder %v536, 2
      %vm538 = vcmp.eq.s32.totalorder %v536, 0
      %v539 = vxor.u32 %v534, 2147483648
      %v540 = vsel %vm538, %v533, %v539
      %vm541 = vcmp.eq.s32.totalorder %v536, 2
      %v542 = vxor.u32 %v533, 2147483648
      %v543 = vsel %vm541, %v542, %v534
      %v544 = vsel %vm537, %v540, %v543
      %v545 = vsel %vm535, nan, %v544
      %v546 = vand.u32 2147483647, %v236
      %vm547 = vcmp.le.f32.partialorder %v546, 0.7853982
      %vm548 = vcmp.lt.s32.totalorder %v236, 0
      %v549 = vand.u32 %v236, 2139095040
      %v550 = vshrl.u32 %v549, 23
      %v551 = vsub.s32 %v550, 127
      %v552 = vand.u32 2147483647, %v236
      %v553 = vand.u32 %v552, 8388607
      %v554 = vor.u32 %v553, 8388608
      %v555 = vsub.s32 0, %v554
      %v556 = vadd.s32 %v551, 1
      %vm557 = vcmp.gt.s32.totalorder %v556, 0
      %v558 = vsel %vm557, %v556, 0
      %v559 = vshrl.u32 %v558, 5
      %v560 = vand.u32 %v558, 31
      %v561 = vsub.s32 32, %v560
      %v562 = vshrl.u32 683565275, %v561
      %v563 = vshll.u32 683565275, %v560
      %v564 = vshrl.u32 2475754826, %v561
      %v565 = vor.u32 %v563, %v564
      %v566 = vshll.u32 2475754826, %v560
      %v567 = vshrl.u32 2131351028, %v561
      %v568 = vor.u32 %v566, %v567
      %v569 = vshll.u32 2131351028, %v560
      %v570 = vshrl.u32 2102212464, %v561
      %v571 = vor.u32 %v569, %v570
      %v572 = vshll.u32 2102212464, %v560
      %v573 = vshrl.u32 920167782, %v561
      %v574 = vor.u32 %v572, %v573
      %v575 = vshll.u32 920167782, %v560
      %v576 = vshrl.u32 1326507024, %v561
      %v577 = vor.u32 %v575, %v576
      %vm578 = vcmp.lt.s32.totalorder %v559, 1
      %vm579 = vcmp.lt.s32.totalorder %v559, 2
      %vm580 = vcmp.lt.s32.totalorder %v559, 3
      %vm581 = vcmp.lt.s32.totalorder %v559, 4
      %v582 = vsel %vm578, %v562, %v565
      %v583 = vsel %vm581, %v571, 2102212464
      %v584 = vsel %vm580, %v568, %v583
      %v585 = vsel %vm579, %v582, %v584
      %v586 = vsel %vm578, %v565, %v568
      %v587 = vsel %vm581, %v574, 920167782
      %v588 = vsel %vm580, %v571, %v587
      %v589 = vsel %vm579, %v586, %v588
      %v590 = vsel %vm578, %v568, %v571
      %v591 = vsel %vm581, %v577, 1326507024
      %v592 = vsel %vm580, %v574, %v591
      %v593 = vsel %vm579, %v590, %v592
      %v594 = vshll.u32 %v554, 8
      %v595 = vmul.u32.u64.compose %v594, %v593
      %v596 = vextract.low.u32 %v595
      %v597 = vextract.high.u32 %v595
      %v598 = vmul.u32.u64.compose %v594, %v589
      %v599 = vextract.low.u32 %v598
      %v600 = vextract.high.u32 %v598
      %v601 = vmul.u32 %v594, %v585
      %v602 = vadd.s32 %v597, %v599
      %vm603 = vc.u32 %v597, %v599
      %v604 = vadd.s32 %v600, 1
      %v605 = vsel %vm603, %v604, %v600
      %v606 = vadd.s32 %v601, %v605
      %v607 = vadd.s32 %v606, 536870912
      %v608 = vshrl.u32 %v607, 30
      %v609 = vshll.u32 %v608, 30
      %v610 = vsub.s32 %v606, %v609
      %vm611 = vcmp.lt.s32.totalorder %v610, 0
      %v612 = vsub.s32 0, %v610
      %v613 = vsel %vm611, %v612, %v610
      %v614 = vclz %v613
      %v615 = vsub.s32 %v614, 2
      %vm616 = vcmp.gt.s32.totalorder 0, %v615
      %v617 = vsel %vm616, 0, %v615
      %v618 = vsub.s32 32, %v617
      %v619 = vshll.u32 %v610, %v617
      %v620 = vshrl.u32 %v602, %v618
      %v621 = vor.u32 %v619, %v620
      %v622 = vsub.s32 4294967266, %v617
      %v623 = vadd.s32 %v622, 127
      %v624 = vshll.u32 %v623, 23
      %v625 = vor.u32 4788187, %v624
      %v626 = vand.u32 2147483647, %v625
      %v628 = vcvt.s32.f32 %v621
      %v629 = vmul.f32 %v628, %v626
      %v630 = vxor.u32 %v629, 2147483648
      %v631 = vsel %vm548, %v630, %v629
      %v632 = vsub.s32 4, %v608
      %v633 = vsel %vm548, %v632, %v608
      %v634 = vsel %vm547, %v236, %v631
      %v635 = vsel %vm547, 0, %v633
      %v636 = vcosq.f32.pop %v634
      %v637 = vsinq.f32.pop %v634
      %vm638 = vweird.f32 %v236
      %v639 = vand.u32 %v635, 3
      %vm640 = vcmp.lt.s32.totalorder %v639, 2
      %vm641 = vcmp.eq.s32.totalorder %v639, 0
      %v642 = vxor.u32 %v637, 2147483648
      %v643 = vsel %vm641, %v636, %v642
      %vm644 = vcmp.eq.s32.totalorder %v639, 2
      %v645 = vxor.u32 %v636, 2147483648
      %v646 = vsel %vm644, %v645, %v637
      %v647 = vsel %vm640, %v643, %v646
      %v648 = vsel %vm638, nan, %v647
      %v649 = vmul.f32 %v204, 0.5
      %v650 = vmul.f32 %v205, 0.5
      %v651 = vmul.f32 %v206, 0.5
      %v652 = vmul.f32 %v207, 0.5
      %653 = vrot.lane.b32.xlu0 %v204, 2
      %v654 = vpop.permute.xlu0 %653
      %655 = vrot.lane.b32.xlu0 %v205, 2
      %v656 = vpop.permute.xlu0 %655
      %657 = vrot.lane.b32.xlu0 %v206, 2
      %v658 = vpop.permute.xlu0 %657
      %659 = vrot.lane.b32.xlu0 %v207, 2
      %v660 = vpop.permute.xlu0 %659
      %v665 = vadd.f32 %v649, %v654
      %v666 = vadd.f32 %v650, %v656
      %v667 = vadd.f32 %v651, %v658
      %v668 = vadd.f32 %v652, %v660
      %v669 = vadd.f32 %v204, 1.0
      %v670 = vadd.f32 %v205, 1.0
      %v671 = vadd.f32 %v206, 1.0
      %v672 = vadd.f32 %v207, 1.0
      %677 = vrot.lane.b32.xlu0 %v665, 76
      %v678 = vpop.permute.xlu0 %677
      %679 = vrot.lane.b32.xlu0 %v666, 76
      %v680 = vpop.permute.xlu0 %679
      %681 = vrot.lane.b32.xlu0 %v667, 76
      %v682 = vpop.permute.xlu0 %681
      %683 = vrot.lane.b32.xlu0 %v668, 76
      %v684 = vpop.permute.xlu0 %683
      %v689 = vmul.f32 %v339, %v678
      %v690 = vmul.f32 %v442, %v680
      %v691 = vmul.f32 %v545, %v682
      %v692 = vmul.f32 %v648, %v684
      %697 = vrot.lane.b32.xlu0 %v689, 127
      %v698 = vpop.permute.xlu0 %697
      %699 = vrot.lane.b32.xlu0 %v690, 127
      %v700 = vpop.permute.xlu0 %699
      %701 = vrot.lane.b32.xlu0 %v691, 127
      %v702 = vpop.permute.xlu0 %701
      %703 = vrot.lane.b32.xlu0 %v692, 127
      %v704 = vpop.permute.xlu0 %703
      %v709 = vsub.f32 %v689, %v698
      %v710 = vsub.f32 %v690, %v700
      %v711 = vsub.f32 %v691, %v702
      %v712 = vsub.f32 %v692, %v704
      %717 = vrot.lane.b32.xlu0 %v709, 1
      %v718 = vpop.permute.xlu0 %717
      %719 = vrot.lane.b32.xlu0 %v710, 1
      %v720 = vpop.permute.xlu0 %719
      %721 = vrot.lane.b32.xlu0 %v711, 1
      %v722 = vpop.permute.xlu0 %721
      %723 = vrot.lane.b32.xlu0 %v712, 1
      %v724 = vpop.permute.xlu0 %723
      %v729 = vmul.f32 %v339, %v718
      %v730 = vmul.f32 %v442, %v720
      %v731 = vmul.f32 %v545, %v722
      %v732 = vmul.f32 %v648, %v724
      %733 = vrot.lane.b32.xlu0 %v665, 75
      %v734 = vpop.permute.xlu0 %733
      %735 = vrot.lane.b32.xlu0 %v666, 75
      %v736 = vpop.permute.xlu0 %735
      %737 = vrot.lane.b32.xlu0 %v667, 75
      %v738 = vpop.permute.xlu0 %737
      %739 = vrot.lane.b32.xlu0 %v668, 75
      %v740 = vpop.permute.xlu0 %739
      %v745 = vmul.f32 %v339, %v734
      %v746 = vmul.f32 %v442, %v736
      %v747 = vmul.f32 %v545, %v738
      %v748 = vmul.f32 %v648, %v740
      %753 = vrot.lane.b32.xlu0 %v745, 1
      %v754 = vpop.permute.xlu0 %753
      %755 = vrot.lane.b32.xlu0 %v746, 1
      %v756 = vpop.permute.xlu0 %755
      %757 = vrot.lane.b32.xlu0 %v747, 1
      %v758 = vpop.permute.xlu0 %757
      %759 = vrot.lane.b32.xlu0 %v748, 1
      %v760 = vpop.permute.xlu0 %759
      %v765 = vadd.f32 %v729, %v754
      %v766 = vadd.f32 %v730, %v756
      %v767 = vadd.f32 %v731, %v758
      %v768 = vadd.f32 %v732, %v760
      %769 = vrot.lane.b32.xlu0 %v709, 48
      %v770 = vpop.permute.xlu0 %769
      %771 = vrot.lane.b32.xlu0 %v710, 48
      %v772 = vpop.permute.xlu0 %771
      %773 = vrot.lane.b32.xlu0 %v711, 48
      %v774 = vpop.permute.xlu0 %773
      %775 = vrot.lane.b32.xlu0 %v712, 48
      %v776 = vpop.permute.xlu0 %775
      %v781 = vmul.f32 %v669, %v770
      %v782 = vmul.f32 %v670, %v772
      %v783 = vmul.f32 %v671, %v774
      %v784 = vmul.f32 %v672, %v776
      %789 = vrot.lane.b32.xlu0 %v765, 48
      %v790 = vpop.permute.xlu0 %789
      %791 = vrot.lane.b32.xlu0 %v766, 48
      %v792 = vpop.permute.xlu0 %791
      %793 = vrot.lane.b32.xlu0 %v767, 48
      %v794 = vpop.permute.xlu0 %793
      %795 = vrot.lane.b32.xlu0 %v768, 48
      %v796 = vpop.permute.xlu0 %795
      %v801 = vmul.f32 %v669, %v790
      %v802 = vmul.f32 %v670, %v792
      %v803 = vmul.f32 %v671, %v794
      %v804 = vmul.f32 %v672, %v796
      %v805 = vld [vmem:[%s0] sm:$0x1]
      %v806 = vld [vmem:[%s0 + $0x1] sm:$0x1]
      %v807 = vld [vmem:[%s0 + $0x2] sm:$0x1]
      %809 = vset.pattern.permute.xlu0 48
      %810 = vperm.xlu0 %809, %v781
      %v811 = vpop.permute.xlu0 %810
      %814 = vset.pattern.permute.xlu0 48
      %815 = vperm.xlu0 %814, %v782
      %v816 = vpop.permute.xlu0 %815
      %819 = vset.pattern.permute.xlu0 48
      %820 = vperm.xlu0 %819, %v783
      %v821 = vpop.permute.xlu0 %820
      %824 = vset.pattern.permute.xlu0 48
      %825 = vperm.xlu0 %824, %v784
      %v826 = vpop.permute.xlu0 %825
      %v828 = vlaneseq
      %v829 = vshrl.u32 %v828, 7
      %v830 = vsub.s32 0, %v829
      %v831 = vrot.slane %v805, %v830
      %v832 = vmul.f32 %v811, %v831
      %v833 = vmul.f32 %v816, %v831
      %v834 = vmul.f32 %v821, %v831
      %v835 = vmul.f32 %v826, %v831
      %837 = vset.pattern.permute.xlu0 49
      %838 = vperm.xlu0 %837, %v801
      %v839 = vpop.permute.xlu0 %838
      %842 = vset.pattern.permute.xlu0 49
      %843 = vperm.xlu0 %842, %v802
      %v844 = vpop.permute.xlu0 %843
      %847 = vset.pattern.permute.xlu0 49
      %848 = vperm.xlu0 %847, %v803
      %v849 = vpop.permute.xlu0 %848
      %852 = vset.pattern.permute.xlu0 49
      %853 = vperm.xlu0 %852, %v804
      %v854 = vpop.permute.xlu0 %853
      %v856 = vlaneseq
      %v857 = vshrl.u32 %v856, 7
      %v858 = vsub.s32 0, %v857
      %v859 = vrot.slane %v806, %v858
      %v860 = vmul.f32 %v839, %v859
      %v861 = vmul.f32 %v844, %v859
      %v862 = vmul.f32 %v849, %v859
      %v863 = vmul.f32 %v854, %v859
      %v864 = vadd.f32 %v832, %v860
      %v865 = vadd.f32 %v833, %v861
      %v866 = vadd.f32 %v834, %v862
      %v867 = vadd.f32 %v835, %v863
      %v868 = vlaneseq
      %v869 = vshrl.u32 %v868, 7
      %v870 = vsub.s32 0, %v869
      %v871 = vrot.slane %v807, %v870
      %v872 = vadd.f32 %v864, %v871
      %v873 = vadd.f32 %v865, %v871
      %v874 = vadd.f32 %v866, %v871
      %v875 = vadd.f32 %v867, %v871
      %v876 = vand.u32 2147483647, %v872
      %vm877 = vcmp.le.f32.partialorder %v876, 0.7853982
      %vm878 = vcmp.lt.s32.totalorder %v872, 0
      %v879 = vand.u32 %v872, 2139095040
      %v880 = vshrl.u32 %v879, 23
      %v881 = vsub.s32 %v880, 127
      %v882 = vand.u32 2147483647, %v872
      %v883 = vand.u32 %v882, 8388607
      %v884 = vor.u32 %v883, 8388608
      %v885 = vsub.s32 0, %v884
      %v886 = vadd.s32 %v881, 1
      %vm887 = vcmp.gt.s32.totalorder %v886, 0
      %v888 = vsel %vm887, %v886, 0
      %v889 = vshrl.u32 %v888, 5
      %v890 = vand.u32 %v888, 31
      %v891 = vsub.s32 32, %v890
      %v892 = vshrl.u32 683565275, %v891
      %v893 = vshll.u32 683565275, %v890
      %v894 = vshrl.u32 2475754826, %v891
      %v895 = vor.u32 %v893, %v894
      %v896 = vshll.u32 2475754826, %v890
      %v897 = vshrl.u32 2131351028, %v891
      %v898 = vor.u32 %v896, %v897
      %v899 = vshll.u32 2131351028, %v890
      %v900 = vshrl.u32 2102212464, %v891
      %v901 = vor.u32 %v899, %v900
      %v902 = vshll.u32 2102212464, %v890
      %v903 = vshrl.u32 920167782, %v891
      %v904 = vor.u32 %v902, %v903
      %v905 = vshll.u32 920167782, %v890
      %v906 = vshrl.u32 1326507024, %v891
      %v907 = vor.u32 %v905, %v906
      %vm908 = vcmp.lt.s32.totalorder %v889, 1
      %vm909 = vcmp.lt.s32.totalorder %v889, 2
      %vm910 = vcmp.lt.s32.totalorder %v889, 3
      %vm911 = vcmp.lt.s32.totalorder %v889, 4
      %v912 = vsel %vm908, %v892, %v895
      %v913 = vsel %vm911, %v901, 2102212464
      %v914 = vsel %vm910, %v898, %v913
      %v915 = vsel %vm909, %v912, %v914
      %v916 = vsel %vm908, %v895, %v898
      %v917 = vsel %vm911, %v904, 920167782
      %v918 = vsel %vm910, %v901, %v917
      %v919 = vsel %vm909, %v916, %v918
      %v920 = vsel %vm908, %v898, %v901
      %v921 = vsel %vm911, %v907, 1326507024
      %v922 = vsel %vm910, %v904, %v921
      %v923 = vsel %vm909, %v920, %v922
      %v924 = vshll.u32 %v884, 8
      %v925 = vmul.u32.u64.compose %v924, %v923
      %v926 = vextract.low.u32 %v925
      %v927 = vextract.high.u32 %v925
      %v928 = vmul.u32.u64.compose %v924, %v919
      %v929 = vextract.low.u32 %v928
      %v930 = vextract.high.u32 %v928
      %v931 = vmul.u32 %v924, %v915
      %v932 = vadd.s32 %v927, %v929
      %vm933 = vc.u32 %v927, %v929
      %v934 = vadd.s32 %v930, 1
      %v935 = vsel %vm933, %v934, %v930
      %v936 = vadd.s32 %v931, %v935
      %v937 = vadd.s32 %v936, 536870912
      %v938 = vshrl.u32 %v937, 30
      %v939 = vshll.u32 %v938, 30
      %v940 = vsub.s32 %v936, %v939
      %vm941 = vcmp.lt.s32.totalorder %v940, 0
      %v942 = vsub.s32 0, %v940
      %v943 = vsel %vm941, %v942, %v940
      %v944 = vclz %v943
      %v945 = vsub.s32 %v944, 2
      %vm946 = vcmp.gt.s32.totalorder 0, %v945
      %v947 = vsel %vm946, 0, %v945
      %v948 = vsub.s32 32, %v947
      %v949 = vshll.u32 %v940, %v947
      %v950 = vshrl.u32 %v932, %v948
      %v951 = vor.u32 %v949, %v950
      %v952 = vsub.s32 4294967266, %v947
      %v953 = vadd.s32 %v952, 127
      %v954 = vshll.u32 %v953, 23
      %v955 = vor.u32 4788187, %v954
      %v956 = vand.u32 2147483647, %v955
      %v958 = vcvt.s32.f32 %v951
      %v959 = vmul.f32 %v958, %v956
      %v960 = vxor.u32 %v959, 2147483648
      %v961 = vsel %vm878, %v960, %v959
      %v962 = vsub.s32 4, %v938
      %v963 = vsel %vm878, %v962, %v938
      %v964 = vsel %vm877, %v872, %v961
      %v965 = vsel %vm877, 0, %v963
      %v966 = vcosq.f32.pop %v964
      %v967 = vsinq.f32.pop %v964
      %vm968 = vweird.f32 %v872
      %v969 = vand.u32 %v965, 3
      %vm970 = vcmp.lt.s32.totalorder %v969, 2
      %vm971 = vcmp.eq.s32.totalorder %v969, 0
      %v972 = vxor.u32 %v967, 2147483648
      %v973 = vsel %vm971, %v966, %v972
      %vm974 = vcmp.eq.s32.totalorder %v969, 2
      %v975 = vxor.u32 %v966, 2147483648
      %v976 = vsel %vm974, %v975, %v967
      %v977 = vsel %vm970, %v973, %v976
      %v978 = vsel %vm968, nan, %v977
      %v979 = vand.u32 2147483647, %v873
      %vm980 = vcmp.le.f32.partialorder %v979, 0.7853982
      %vm981 = vcmp.lt.s32.totalorder %v873, 0
      %v982 = vand.u32 %v873, 2139095040
      %v983 = vshrl.u32 %v982, 23
      %v984 = vsub.s32 %v983, 127
      %v985 = vand.u32 2147483647, %v873
      %v986 = vand.u32 %v985, 8388607
      %v987 = vor.u32 %v986, 8388608
      %v988 = vsub.s32 0, %v987
      %v989 = vadd.s32 %v984, 1
      %vm990 = vcmp.gt.s32.totalorder %v989, 0
      %v991 = vsel %vm990, %v989, 0
      %v992 = vshrl.u32 %v991, 5
      %v993 = vand.u32 %v991, 31
      %v994 = vsub.s32 32, %v993
      %v995 = vshrl.u32 683565275, %v994
      %v996 = vshll.u32 683565275, %v993
      %v997 = vshrl.u32 2475754826, %v994
      %v998 = vor.u32 %v996, %v997
      %v999 = vshll.u32 2475754826, %v993
      %v1000 = vshrl.u32 2131351028, %v994
      %v1001 = vor.u32 %v999, %v1000
      %v1002 = vshll.u32 2131351028, %v993
      %v1003 = vshrl.u32 2102212464, %v994
      %v1004 = vor.u32 %v1002, %v1003
      %v1005 = vshll.u32 2102212464, %v993
      %v1006 = vshrl.u32 920167782, %v994
      %v1007 = vor.u32 %v1005, %v1006
      %v1008 = vshll.u32 920167782, %v993
      %v1009 = vshrl.u32 1326507024, %v994
      %v1010 = vor.u32 %v1008, %v1009
      %vm1011 = vcmp.lt.s32.totalorder %v992, 1
      %vm1012 = vcmp.lt.s32.totalorder %v992, 2
      %vm1013 = vcmp.lt.s32.totalorder %v992, 3
      %vm1014 = vcmp.lt.s32.totalorder %v992, 4
      %v1015 = vsel %vm1011, %v995, %v998
      %v1016 = vsel %vm1014, %v1004, 2102212464
      %v1017 = vsel %vm1013, %v1001, %v1016
      %v1018 = vsel %vm1012, %v1015, %v1017
      %v1019 = vsel %vm1011, %v998, %v1001
      %v1020 = vsel %vm1014, %v1007, 920167782
      %v1021 = vsel %vm1013, %v1004, %v1020
      %v1022 = vsel %vm1012, %v1019, %v1021
      %v1023 = vsel %vm1011, %v1001, %v1004
      %v1024 = vsel %vm1014, %v1010, 1326507024
      %v1025 = vsel %vm1013, %v1007, %v1024
      %v1026 = vsel %vm1012, %v1023, %v1025
      %v1027 = vshll.u32 %v987, 8
      %v1028 = vmul.u32.u64.compose %v1027, %v1026
      %v1029 = vextract.low.u32 %v1028
      %v1030 = vextract.high.u32 %v1028
      %v1031 = vmul.u32.u64.compose %v1027, %v1022
      %v1032 = vextract.low.u32 %v1031
      %v1033 = vextract.high.u32 %v1031
      %v1034 = vmul.u32 %v1027, %v1018
      %v1035 = vadd.s32 %v1030, %v1032
      %vm1036 = vc.u32 %v1030, %v1032
      %v1037 = vadd.s32 %v1033, 1
      %v1038 = vsel %vm1036, %v1037, %v1033
      %v1039 = vadd.s32 %v1034, %v1038
      %v1040 = vadd.s32 %v1039, 536870912
      %v1041 = vshrl.u32 %v1040, 30
      %v1042 = vshll.u32 %v1041, 30
      %v1043 = vsub.s32 %v1039, %v1042
      %vm1044 = vcmp.lt.s32.totalorder %v1043, 0
      %v1045 = vsub.s32 0, %v1043
      %v1046 = vsel %vm1044, %v1045, %v1043
      %v1047 = vclz %v1046
      %v1048 = vsub.s32 %v1047, 2
      %vm1049 = vcmp.gt.s32.totalorder 0, %v1048
      %v1050 = vsel %vm1049, 0, %v1048
      %v1051 = vsub.s32 32, %v1050
      %v1052 = vshll.u32 %v1043, %v1050
      %v1053 = vshrl.u32 %v1035, %v1051
      %v1054 = vor.u32 %v1052, %v1053
      %v1055 = vsub.s32 4294967266, %v1050
      %v1056 = vadd.s32 %v1055, 127
      %v1057 = vshll.u32 %v1056, 23
      %v1058 = vor.u32 4788187, %v1057
      %v1059 = vand.u32 2147483647, %v1058
      %v1061 = vcvt.s32.f32 %v1054
      %v1062 = vmul.f32 %v1061, %v1059
      %v1063 = vxor.u32 %v1062, 2147483648
      %v1064 = vsel %vm981, %v1063, %v1062
      %v1065 = vsub.s32 4, %v1041
      %v1066 = vsel %vm981, %v1065, %v1041
      %v1067 = vsel %vm980, %v873, %v1064
      %v1068 = vsel %vm980, 0, %v1066
      %v1069 = vcosq.f32.pop %v1067
      %v1070 = vsinq.f32.pop %v1067
      %vm1071 = vweird.f32 %v873
      %v1072 = vand.u32 %v1068, 3
      %vm1073 = vcmp.lt.s32.totalorder %v1072, 2
      %vm1074 = vcmp.eq.s32.totalorder %v1072, 0
      %v1075 = vxor.u32 %v1070, 2147483648
      %v1076 = vsel %vm1074, %v1069, %v1075
      %vm1077 = vcmp.eq.s32.totalorder %v1072, 2
      %v1078 = vxor.u32 %v1069, 2147483648
      %v1079 = vsel %vm1077, %v1078, %v1070
      %v1080 = vsel %vm1073, %v1076, %v1079
      %v1081 = vsel %vm1071, nan, %v1080
      %v1082 = vand.u32 2147483647, %v874
      %vm1083 = vcmp.le.f32.partialorder %v1082, 0.7853982
      %vm1084 = vcmp.lt.s32.totalorder %v874, 0
      %v1085 = vand.u32 %v874, 2139095040
      %v1086 = vshrl.u32 %v1085, 23
      %v1087 = vsub.s32 %v1086, 127
      %v1088 = vand.u32 2147483647, %v874
      %v1089 = vand.u32 %v1088, 8388607
      %v1090 = vor.u32 %v1089, 8388608
      %v1091 = vsub.s32 0, %v1090
      %v1092 = vadd.s32 %v1087, 1
      %vm1093 = vcmp.gt.s32.totalorder %v1092, 0
      %v1094 = vsel %vm1093, %v1092, 0
      %v1095 = vshrl.u32 %v1094, 5
      %v1096 = vand.u32 %v1094, 31
      %v1097 = vsub.s32 32, %v1096
      %v1098 = vshrl.u32 683565275, %v1097
      %v1099 = vshll.u32 683565275, %v1096
      %v1100 = vshrl.u32 2475754826, %v1097
      %v1101 = vor.u32 %v1099, %v1100
      %v1102 = vshll.u32 2475754826, %v1096
      %v1103 = vshrl.u32 2131351028, %v1097
      %v1104 = vor.u32 %v1102, %v1103
      %v1105 = vshll.u32 2131351028, %v1096
      %v1106 = vshrl.u32 2102212464, %v1097
      %v1107 = vor.u32 %v1105, %v1106
      %v1108 = vshll.u32 2102212464, %v1096
      %v1109 = vshrl.u32 920167782, %v1097
      %v1110 = vor.u32 %v1108, %v1109
      %v1111 = vshll.u32 920167782, %v1096
      %v1112 = vshrl.u32 1326507024, %v1097
      %v1113 = vor.u32 %v1111, %v1112
      %vm1114 = vcmp.lt.s32.totalorder %v1095, 1
      %vm1115 = vcmp.lt.s32.totalorder %v1095, 2
      %vm1116 = vcmp.lt.s32.totalorder %v1095, 3
      %vm1117 = vcmp.lt.s32.totalorder %v1095, 4
      %v1118 = vsel %vm1114, %v1098, %v1101
      %v1119 = vsel %vm1117, %v1107, 2102212464
      %v1120 = vsel %vm1116, %v1104, %v1119
      %v1121 = vsel %vm1115, %v1118, %v1120
      %v1122 = vsel %vm1114, %v1101, %v1104
      %v1123 = vsel %vm1117, %v1110, 920167782
      %v1124 = vsel %vm1116, %v1107, %v1123
      %v1125 = vsel %vm1115, %v1122, %v1124
      %v1126 = vsel %vm1114, %v1104, %v1107
      %v1127 = vsel %vm1117, %v1113, 1326507024
      %v1128 = vsel %vm1116, %v1110, %v1127
      %v1129 = vsel %vm1115, %v1126, %v1128
      %v1130 = vshll.u32 %v1090, 8
      %v1131 = vmul.u32.u64.compose %v1130, %v1129
      %v1132 = vextract.low.u32 %v1131
      %v1133 = vextract.high.u32 %v1131
      %v1134 = vmul.u32.u64.compose %v1130, %v1125
      %v1135 = vextract.low.u32 %v1134
      %v1136 = vextract.high.u32 %v1134
      %v1137 = vmul.u32 %v1130, %v1121
      %v1138 = vadd.s32 %v1133, %v1135
      %vm1139 = vc.u32 %v1133, %v1135
      %v1140 = vadd.s32 %v1136, 1
      %v1141 = vsel %vm1139, %v1140, %v1136
      %v1142 = vadd.s32 %v1137, %v1141
      %v1143 = vadd.s32 %v1142, 536870912
      %v1144 = vshrl.u32 %v1143, 30
      %v1145 = vshll.u32 %v1144, 30
      %v1146 = vsub.s32 %v1142, %v1145
      %vm1147 = vcmp.lt.s32.totalorder %v1146, 0
      %v1148 = vsub.s32 0, %v1146
      %v1149 = vsel %vm1147, %v1148, %v1146
      %v1150 = vclz %v1149
      %v1151 = vsub.s32 %v1150, 2
      %vm1152 = vcmp.gt.s32.totalorder 0, %v1151
      %v1153 = vsel %vm1152, 0, %v1151
      %v1154 = vsub.s32 32, %v1153
      %v1155 = vshll.u32 %v1146, %v1153
      %v1156 = vshrl.u32 %v1138, %v1154
      %v1157 = vor.u32 %v1155, %v1156
      %v1158 = vsub.s32 4294967266, %v1153
      %v1159 = vadd.s32 %v1158, 127
      %v1160 = vshll.u32 %v1159, 23
      %v1161 = vor.u32 4788187, %v1160
      %v1162 = vand.u32 2147483647, %v1161
      %v1164 = vcvt.s32.f32 %v1157
      %v1165 = vmul.f32 %v1164, %v1162
      %v1166 = vxor.u32 %v1165, 2147483648
      %v1167 = vsel %vm1084, %v1166, %v1165
      %v1168 = vsub.s32 4, %v1144
      %v1169 = vsel %vm1084, %v1168, %v1144
      %v1170 = vsel %vm1083, %v874, %v1167
      %v1171 = vsel %vm1083, 0, %v1169
      %v1172 = vcosq.f32.pop %v1170
      %v1173 = vsinq.f32.pop %v1170
      %vm1174 = vweird.f32 %v874
      %v1175 = vand.u32 %v1171, 3
      %vm1176 = vcmp.lt.s32.totalorder %v1175, 2
      %vm1177 = vcmp.eq.s32.totalorder %v1175, 0
      %v1178 = vxor.u32 %v1173, 2147483648
      %v1179 = vsel %vm1177, %v1172, %v1178
      %vm1180 = vcmp.eq.s32.totalorder %v1175, 2
      %v1181 = vxor.u32 %v1172, 2147483648
      %v1182 = vsel %vm1180, %v1181, %v1173
      %v1183 = vsel %vm1176, %v1179, %v1182
      %v1184 = vsel %vm1174, nan, %v1183
      %v1185 = vand.u32 2147483647, %v875
      %vm1186 = vcmp.le.f32.partialorder %v1185, 0.7853982
      %vm1187 = vcmp.lt.s32.totalorder %v875, 0
      %v1188 = vand.u32 %v875, 2139095040
      %v1189 = vshrl.u32 %v1188, 23
      %v1190 = vsub.s32 %v1189, 127
      %v1191 = vand.u32 2147483647, %v875
      %v1192 = vand.u32 %v1191, 8388607
      %v1193 = vor.u32 %v1192, 8388608
      %v1194 = vsub.s32 0, %v1193
      %v1195 = vadd.s32 %v1190, 1
      %vm1196 = vcmp.gt.s32.totalorder %v1195, 0
      %v1197 = vsel %vm1196, %v1195, 0
      %v1198 = vshrl.u32 %v1197, 5
      %v1199 = vand.u32 %v1197, 31
      %v1200 = vsub.s32 32, %v1199
      %v1201 = vshrl.u32 683565275, %v1200
      %v1202 = vshll.u32 683565275, %v1199
      %v1203 = vshrl.u32 2475754826, %v1200
      %v1204 = vor.u32 %v1202, %v1203
      %v1205 = vshll.u32 2475754826, %v1199
      %v1206 = vshrl.u32 2131351028, %v1200
      %v1207 = vor.u32 %v1205, %v1206
      %v1208 = vshll.u32 2131351028, %v1199
      %v1209 = vshrl.u32 2102212464, %v1200
      %v1210 = vor.u32 %v1208, %v1209
      %v1211 = vshll.u32 2102212464, %v1199
      %v1212 = vshrl.u32 920167782, %v1200
      %v1213 = vor.u32 %v1211, %v1212
      %v1214 = vshll.u32 920167782, %v1199
      %v1215 = vshrl.u32 1326507024, %v1200
      %v1216 = vor.u32 %v1214, %v1215
      %vm1217 = vcmp.lt.s32.totalorder %v1198, 1
      %vm1218 = vcmp.lt.s32.totalorder %v1198, 2
      %vm1219 = vcmp.lt.s32.totalorder %v1198, 3
      %vm1220 = vcmp.lt.s32.totalorder %v1198, 4
      %v1221 = vsel %vm1217, %v1201, %v1204
      %v1222 = vsel %vm1220, %v1210, 2102212464
      %v1223 = vsel %vm1219, %v1207, %v1222
      %v1224 = vsel %vm1218, %v1221, %v1223
      %v1225 = vsel %vm1217, %v1204, %v1207
      %v1226 = vsel %vm1220, %v1213, 920167782
      %v1227 = vsel %vm1219, %v1210, %v1226
      %v1228 = vsel %vm1218, %v1225, %v1227
      %v1229 = vsel %vm1217, %v1207, %v1210
      %v1230 = vsel %vm1220, %v1216, 1326507024
      %v1231 = vsel %vm1219, %v1213, %v1230
      %v1232 = vsel %vm1218, %v1229, %v1231
      %v1233 = vshll.u32 %v1193, 8
      %v1234 = vmul.u32.u64.compose %v1233, %v1232
      %v1235 = vextract.low.u32 %v1234
      %v1236 = vextract.high.u32 %v1234
      %v1237 = vmul.u32.u64.compose %v1233, %v1228
      %v1238 = vextract.low.u32 %v1237
      %v1239 = vextract.high.u32 %v1237
      %v1240 = vmul.u32 %v1233, %v1224
      %v1241 = vadd.s32 %v1236, %v1238
      %vm1242 = vc.u32 %v1236, %v1238
      %v1243 = vadd.s32 %v1239, 1
      %v1244 = vsel %vm1242, %v1243, %v1239
      %v1245 = vadd.s32 %v1240, %v1244
      %v1246 = vadd.s32 %v1245, 536870912
      %v1247 = vshrl.u32 %v1246, 30
      %v1248 = vshll.u32 %v1247, 30
      %v1249 = vsub.s32 %v1245, %v1248
      %vm1250 = vcmp.lt.s32.totalorder %v1249, 0
      %v1251 = vsub.s32 0, %v1249
      %v1252 = vsel %vm1250, %v1251, %v1249
      %v1253 = vclz %v1252
      %v1254 = vsub.s32 %v1253, 2
      %vm1255 = vcmp.gt.s32.totalorder 0, %v1254
      %v1256 = vsel %vm1255, 0, %v1254
      %v1257 = vsub.s32 32, %v1256
      %v1258 = vshll.u32 %v1249, %v1256
      %v1259 = vshrl.u32 %v1241, %v1257
      %v1260 = vor.u32 %v1258, %v1259
      %v1261 = vsub.s32 4294967266, %v1256
      %v1262 = vadd.s32 %v1261, 127
      %v1263 = vshll.u32 %v1262, 23
      %v1264 = vor.u32 4788187, %v1263
      %v1265 = vand.u32 2147483647, %v1264
      %v1267 = vcvt.s32.f32 %v1260
      %v1268 = vmul.f32 %v1267, %v1265
      %v1269 = vxor.u32 %v1268, 2147483648
      %v1270 = vsel %vm1187, %v1269, %v1268
      %v1271 = vsub.s32 4, %v1247
      %v1272 = vsel %vm1187, %v1271, %v1247
      %v1273 = vsel %vm1186, %v875, %v1270
      %v1274 = vsel %vm1186, 0, %v1272
      %v1275 = vcosq.f32.pop %v1273
      %v1276 = vsinq.f32.pop %v1273
      %vm1277 = vweird.f32 %v875
      %v1278 = vand.u32 %v1274, 3
      %vm1279 = vcmp.lt.s32.totalorder %v1278, 2
      %vm1280 = vcmp.eq.s32.totalorder %v1278, 0
      %v1281 = vxor.u32 %v1276, 2147483648
      %v1282 = vsel %vm1280, %v1275, %v1281
      %vm1283 = vcmp.eq.s32.totalorder %v1278, 2
      %v1284 = vxor.u32 %v1275, 2147483648
      %v1285 = vsel %vm1283, %v1284, %v1276
      %v1286 = vsel %vm1279, %v1282, %v1285
      %v1287 = vsel %vm1277, nan, %v1286
      %v1288 = vld [vmem:[%s1] sm:$0xff]
      %v1289 = vld [vmem:[%s1 + $0x8] sm:$0xff]
      %v1290 = vld [vmem:[%s1 + $0x10] sm:$0xff]
      %v1291 = vld [vmem:[%s1 + $0x18] sm:$0xff]
      %v1292 = vld [vmem:[%s1 + $0x20] sm:$0xff]
      %v1293 = vld [vmem:[%s1 + $0x28] sm:$0xff]
      %v1294 = vld [vmem:[%s1 + $0x30] sm:$0xff]
      %v1295 = vld [vmem:[%s1 + $0x38] sm:$0xff]
      %vm1296 = vcmask 261120
      %v1298 = vsel %vm1296, %v978, 0
      %v1301 = vsel %vm1296, %v1081, 0
      %v1304 = vsel %vm1296, %v1184, 0
      %v1307 = vsel %vm1296, %v1287, 0
      %v1309 = vand.u32 %v1289, 4294901760
      %1310 = vmatprep.subr.mxu0 %v1309
      %v1311 = vand.u32 %v1288, 4294901760
      %1312 = vmatpush1.msra.mxu0 %v1311
      %v1313 = vand.u32 %v1291, 4294901760
      %1314 = vmatprep.subr.mxu0 %v1313
      %v1315 = vand.u32 %v1290, 4294901760
      %1316 = vmatpush1.msra.mxu0 %v1315
      %v1317 = vand.u32 %v1293, 4294901760
      %1318 = vmatprep.subr.mxu0 %v1317
      %v1319 = vand.u32 %v1292, 4294901760
      %1320 = vmatpush1.msra.mxu0 %v1319
      %v1321 = vand.u32 %v1295, 4294901760
      %1322 = vmatprep.subr.mxu0 %v1321
      %v1323 = vand.u32 %v1294, 4294901760
      %1324 = vmatpush1.msra.mxu0 %v1323
      %1325 = vmatprep.subr.mxu0 0.0
      %1326 = vmatpush1.msra.mxu0 0.0
      %1327 = vmatprep.subr.mxu0 0.0
      %1328 = vmatpush1.msra.mxu0 0.0
      %1329 = vmatprep.subr.mxu0 0.0
      %1330 = vmatpush1.msra.mxu0 0.0
      %1331 = vmatprep.subr.mxu0 0.0
      %1332 = vmatpush1.msra.mxu0 0.0
      %1333 = vmatprep.subr.mxu0 0.0
      %1334 = vmatpush1.msra.mxu0 0.0
      %1335 = vmatprep.subr.mxu0 0.0
      %1336 = vmatpush1.msra.mxu0 0.0
      %1337 = vmatprep.subr.mxu0 0.0
      %1338 = vmatpush1.msra.mxu0 0.0
      %1339 = vmatprep.subr.mxu0 0.0
      %1340 = vmatpush1.msra.mxu0 0.0
      %1341 = vmatprep.subr.mxu0 0.0
      %1342 = vmatpush1.msra.mxu0 0.0
      %1343 = vmatprep.subr.mxu0 0.0
      %1344 = vmatpush1.msra.mxu0 0.0
      %1345 = vmatprep.subr.mxu0 0.0
      %1346 = vmatpush1.msra.mxu0 0.0
      %1347 = vmatprep.subr.mxu0 0.0
      %1348 = vmatpush1.msra.mxu0 0.0
      %1349 = vmatprep.subr.mxu0 0.0
      %1350 = vmatpush1.msra.mxu0 0.0
      %1351 = vmatprep.subr.mxu0 0.0
      %1352 = vmatpush1.msra.mxu0 0.0
      %1353 = vmatprep.subr.mxu0 0.0
      %1354 = vmatpush1.msra.mxu0 0.0
      %1355 = vmatprep.subr.mxu0 0.0
      %1356 = vmatpush1.msra.mxu0 0.0
      %1357 = vmatprep.subr.mxu0 0.0
      %1358 = vmatpush1.msra.mxu0 0.0
      %1359 = vmatprep.subr.mxu0 0.0
      %1360 = vmatpush1.msra.mxu0 0.0
      %1361 = vmatprep.subr.mxu0 0.0
      %1362 = vmatpush1.msra.mxu0 0.0
      %1363 = vmatprep.subr.mxu0 0.0
      %1364 = vmatpush1.msra.mxu0 0.0
      %1365 = vmatprep.subr.mxu0 0.0
      %1366 = vmatpush1.msra.mxu0 0.0
      %1367 = vmatprep.subr.mxu0 0.0
      %1368 = vmatpush1.msra.mxu0 0.0
      %1369 = vmatprep.subr.mxu0 0.0
      %1370 = vmatpush1.msra.mxu0 0.0
      %1371 = vmatprep.subr.mxu0 0.0
      %1372 = vmatpush1.msra.mxu0 0.0
      %1373 = vmatprep.subr.mxu0 0.0
      %1374 = vmatpush1.msra.mxu0 0.0
      %1375 = vmatprep.subr.mxu0 0.0
      %1376 = vmatpush1.msra.mxu0 0.0
      %1377 = vmatprep.subr.mxu0 0.0
      %1378 = vmatpush1.msra.mxu0 0.0
      %1379 = vmatprep.subr.mxu0 0.0
      %1380 = vmatpush1.msra.mxu0 0.0
      %1381 = vmatprep.mubr.f32.mxu0 0.0
      %v1382 = vand.u32 %v1298, 4294901760
      %v1383 = vsub.f32 %v1298, %v1382
      %v1384 = vand.u32 %v1383, 4294901760
      %v1385 = vsub.f32 %v1383, %v1384
      %v1386 = vand.u32 %v1385, 4294901760
      %1387 = vmatmul.mubr.f32.gmra.mrb[0].mxu0 %v1386
      %v1388 = vpop.f32.mrb[0].mxu0
      %v1389 = vadd.f32 0.0, %v1388
      %v1390 = vpop.f32.mrb[0].mxu0
      %v1391 = vadd.f32 0.0, %v1390
      %1392 = vmatprep.mubr.f32.mxu0 0.0
      %v1393 = vand.u32 %v1301, 4294901760
      %v1394 = vsub.f32 %v1301, %v1393
      %v1395 = vand.u32 %v1394, 4294901760
      %v1396 = vsub.f32 %v1394, %v1395
      %v1397 = vand.u32 %v1396, 4294901760
      %1398 = vmatmul.mubr.f32.gmra.mrb[0].mxu0 %v1397
      %v1399 = vpop.f32.mrb[0].mxu0
      %v1400 = vadd.f32 0.0, %v1399
      %v1401 = vpop.f32.mrb[0].mxu0
      %v1402 = vadd.f32 0.0, %v1401
      %1403 = vmatprep.mubr.f32.mxu0 0.0
      %v1404 = vand.u32 %v1304, 4294901760
      %v1405 = vsub.f32 %v1304, %v1404
      %v1406 = vand.u32 %v1405, 4294901760
      %v1407 = vsub.f32 %v1405, %v1406
      %v1408 = vand.u32 %v1407, 4294901760
      %1409 = vmatmul.mubr.f32.gmra.mrb[0].mxu0 %v1408
      %v1410 = vpop.f32.mrb[0].mxu0
      %v1411 = vadd.f32 0.0, %v1410
      %v1412 = vpop.f32.mrb[0].mxu0
      %v1413 = vadd.f32 0.0, %v1412
      %1414 = vmatprep.mubr.f32.mxu0 0.0
      %v1415 = vand.u32 %v1307, 4294901760
      %v1416 = vsub.f32 %v1307, %v1415
      %v1417 = vand.u32 %v1416, 4294901760
      %v1418 = vsub.f32 %v1416, %v1417
      %v1419 = vand.u32 %v1418, 4294901760
      %1420 = vmatmul.mubr.f32.gmra.mrb[0].mxu0 %v1419
      %v1421 = vpop.f32.mrb[0].mxu0
      %v1422 = vadd.f32 0.0, %v1421
      %v1423 = vpop.f32.mrb[0].mxu0
      %v1424 = vadd.f32 0.0, %v1423
      %1425 = vdwg.mxu0
      %v1426 = vand.u32 %v1289, 4294901760
      %v1427 = vsub.f32 %v1289, %v1426
      %v1428 = vand.u32 %v1427, 4294901760
      %v1429 = vsub.f32 %v1427, %v1428
      %v1430 = vand.u32 %v1429, 4294901760
      %1431 = vmatprep.subr.mxu0 %v1430
      %v1432 = vand.u32 %v1288, 4294901760
      %v1433 = vsub.f32 %v1288, %v1432
      %v1434 = vand.u32 %v1433, 4294901760
      %v1435 = vsub.f32 %v1433, %v1434
      %v1436 = vand.u32 %v1435, 4294901760
      %1437 = vmatpush1.msra.mxu0 %v1436
      %v1438 = vand.u32 %v1291, 4294901760
      %v1439 = vsub.f32 %v1291, %v1438
      %v1440 = vand.u32 %v1439, 4294901760
      %v1441 = vsub.f32 %v1439, %v1440
      %v1442 = vand.u32 %v1441, 4294901760
      %1443 = vmatprep.subr.mxu0 %v1442
      %v1444 = vand.u32 %v1290, 4294901760
      %v1445 = vsub.f32 %v1290, %v1444
      %v1446 = vand.u32 %v1445, 4294901760
      %v1447 = vsub.f32 %v1445, %v1446
      %v1448 = vand.u32 %v1447, 4294901760
      %1449 = vmatpush1.msra.mxu0 %v1448
      %v1450 = vand.u32 %v1293, 4294901760
      %v1451 = vsub.f32 %v1293, %v1450
      %v1452 = vand.u32 %v1451, 4294901760
      %v1453 = vsub.f32 %v1451, %v1452
      %v1454 = vand.u32 %v1453, 4294901760
      %1455 = vmatprep.subr.mxu0 %v1454
      %v1456 = vand.u32 %v1292, 4294901760
      %v1457 = vsub.f32 %v1292, %v1456
      %v1458 = vand.u32 %v1457, 4294901760
      %v1459 = vsub.f32 %v1457, %v1458
      %v1460 = vand.u32 %v1459, 4294901760
      %1461 = vmatpush1.msra.mxu0 %v1460
      %v1462 = vand.u32 %v1295, 4294901760
      %v1463 = vsub.f32 %v1295, %v1462
      %v1464 = vand.u32 %v1463, 4294901760
      %v1465 = vsub.f32 %v1463, %v1464
      %v1466 = vand.u32 %v1465, 4294901760
      %1467 = vmatprep.subr.mxu0 %v1466
      %v1468 = vand.u32 %v1294, 4294901760
      %v1469 = vsub.f32 %v1294, %v1468
      %v1470 = vand.u32 %v1469, 4294901760
      %v1471 = vsub.f32 %v1469, %v1470
      %v1472 = vand.u32 %v1471, 4294901760
      %1473 = vmatpush1.msra.mxu0 %v1472
      %1474 = vmatprep.subr.mxu0 0.0
      %1475 = vmatpush1.msra.mxu0 0.0
      %1476 = vmatprep.subr.mxu0 0.0
      %1477 = vmatpush1.msra.mxu0 0.0
      %1478 = vmatprep.subr.mxu0 0.0
      %1479 = vmatpush1.msra.mxu0 0.0
      %1480 = vmatprep.subr.mxu0 0.0
      %1481 = vmatpush1.msra.mxu0 0.0
      %1482 = vmatprep.subr.mxu0 0.0
      %1483 = vmatpush1.msra.mxu0 0.0
      %1484 = vmatprep.subr.mxu0 0.0
      %1485 = vmatpush1.msra.mxu0 0.0
      %1486 = vmatprep.subr.mxu0 0.0
      %1487 = vmatpush1.msra.mxu0 0.0
      %1488 = vmatprep.subr.mxu0 0.0
      %1489 = vmatpush1.msra.mxu0 0.0
      %1490 = vmatprep.subr.mxu0 0.0
      %1491 = vmatpush1.msra.mxu0 0.0
      %1492 = vmatprep.subr.mxu0 0.0
      %1493 = vmatpush1.msra.mxu0 0.0
      %1494 = vmatprep.subr.mxu0 0.0
      %1495 = vmatpush1.msra.mxu0 0.0
      %1496 = vmatprep.subr.mxu0 0.0
      %1497 = vmatpush1.msra.mxu0 0.0
      %1498 = vmatprep.subr.mxu0 0.0
      %1499 = vmatpush1.msra.mxu0 0.0
      %1500 = vmatprep.subr.mxu0 0.0
      %1501 = vmatpush1.msra.mxu0 0.0
      %1502 = vmatprep.subr.mxu0 0.0
      %1503 = vmatpush1.msra.mxu0 0.0
      %1504 = vmatprep.subr.mxu0 0.0
      %1505 = vmatpush1.msra.mxu0 0.0
      %1506 = vmatprep.subr.mxu0 0.0
      %1507 = vmatpush1.msra.mxu0 0.0
      %1508 = vmatprep.subr.mxu0 0.0
      %1509 = vmatpush1.msra.mxu0 0.0
      %1510 = vmatprep.subr.mxu0 0.0
      %1511 = vmatpush1.msra.mxu0 0.0
      %1512 = vmatprep.subr.mxu0 0.0
      %1513 = vmatpush1.msra.mxu0 0.0
      %1514 = vmatprep.subr.mxu0 0.0
      %1515 = vmatpush1.msra.mxu0 0.0
      %1516 = vmatprep.subr.mxu0 0.0
      %1517 = vmatpush1.msra.mxu0 0.0
      %1518 = vmatprep.subr.mxu0 0.0
      %1519 = vmatpush1.msra.mxu0 0.0
      %1520 = vmatprep.subr.mxu0 0.0
      %1521 = vmatpush1.msra.mxu0 0.0
      %1522 = vmatprep.subr.mxu0 0.0
      %1523 = vmatpush1.msra.mxu0 0.0
      %1524 = vmatprep.subr.mxu0 0.0
      %1525 = vmatpush1.msra.mxu0 0.0
      %1526 = vmatprep.subr.mxu0 0.0
      %1527 = vmatpush1.msra.mxu0 0.0
      %1528 = vmatprep.subr.mxu0 0.0
      %1529 = vmatpush1.msra.mxu0 0.0
      %1530 = vmatprep.mubr.f32.mxu0 0.0
      %v1531 = vand.u32 %v1298, 4294901760
      %1532 = vmatmul.mubr.f32.gmra.mrb[0].mxu0 %v1531
      %v1533 = vpop.f32.mrb[0].mxu0
      %v1534 = vadd.f32 %v1389, %v1533
      %v1535 = vpop.f32.mrb[0].mxu0
      %v1536 = vadd.f32 %v1391, %v1535
      %1537 = vmatprep.mubr.f32.mxu0 0.0
      %v1538 = vand.u32 %v1301, 4294901760
      %1539 = vmatmul.mubr.f32.gmra.mrb[0].mxu0 %v1538
      %v1540 = vpop.f32.mrb[0].mxu0
      %v1541 = vadd.f32 %v1400, %v1540
      %v1542 = vpop.f32.mrb[0].mxu0
      %v1543 = vadd.f32 %v1402, %v1542
      %1544 = vmatprep.mubr.f32.mxu0 0.0
      %v1545 = vand.u32 %v1304, 4294901760
      %1546 = vmatmul.mubr.f32.gmra.mrb[0].mxu0 %v1545
      %v1547 = vpop.f32.mrb[0].mxu0
      %v1548 = vadd.f32 %v1411, %v1547
      %v1549 = vpop.f32.mrb[0].mxu0
      %v1550 = vadd.f32 %v1413, %v1549
      %1551 = vmatprep.mubr.f32.mxu0 0.0
      %v1552 = vand.u32 %v1307, 4294901760
      %1553 = vmatmul.mubr.f32.gmra.mrb[0].mxu0 %v1552
      %v1554 = vpop.f32.mrb[0].mxu0
      %v1555 = vadd.f32 %v1422, %v1554
      %v1556 = vpop.f32.mrb[0].mxu0
      %v1557 = vadd.f32 %v1424, %v1556
      %1558 = vdwg.mxu0
      %v1559 = vand.u32 %v1289, 4294901760
      %v1560 = vsub.f32 %v1289, %v1559
      %1561 = vmatprep.subr.mxu0 %v1560
      %v1562 = vand.u32 %v1288, 4294901760
      %v1563 = vsub.f32 %v1288, %v1562
      %1564 = vmatpush1.msra.mxu0 %v1563
      %v1565 = vand.u32 %v1291, 4294901760
      %v1566 = vsub.f32 %v1291, %v1565
      %1567 = vmatprep.subr.mxu0 %v1566
      %v1568 = vand.u32 %v1290, 4294901760
      %v1569 = vsub.f32 %v1290, %v1568
      %1570 = vmatpush1.msra.mxu0 %v1569
      %v1571 = vand.u32 %v1293, 4294901760
      %v1572 = vsub.f32 %v1293, %v1571
      %1573 = vmatprep.subr.mxu0 %v1572
      %v1574 = vand.u32 %v1292, 4294901760
      %v1575 = vsub.f32 %v1292, %v1574
      %1576 = vmatpush1.msra.mxu0 %v1575
      %v1577 = vand.u32 %v1295, 4294901760
      %v1578 = vsub.f32 %v1295, %v1577
      %1579 = vmatprep.subr.mxu0 %v1578
      %v1580 = vand.u32 %v1294, 4294901760
      %v1581 = vsub.f32 %v1294, %v1580
      %1582 = vmatpush1.msra.mxu0 %v1581
      %1583 = vmatprep.subr.mxu0 0.0
      %1584 = vmatpush1.msra.mxu0 0.0
      %1585 = vmatprep.subr.mxu0 0.0
      %1586 = vmatpush1.msra.mxu0 0.0
      %1587 = vmatprep.subr.mxu0 0.0
      %1588 = vmatpush1.msra.mxu0 0.0
      %1589 = vmatprep.subr.mxu0 0.0
      %1590 = vmatpush1.msra.mxu0 0.0
      %1591 = vmatprep.subr.mxu0 0.0
      %1592 = vmatpush1.msra.mxu0 0.0
      %1593 = vmatprep.subr.mxu0 0.0
      %1594 = vmatpush1.msra.mxu0 0.0
      %1595 = vmatprep.subr.mxu0 0.0
      %1596 = vmatpush1.msra.mxu0 0.0
      %1597 = vmatprep.subr.mxu0 0.0
      %1598 = vmatpush1.msra.mxu0 0.0
      %1599 = vmatprep.subr.mxu0 0.0
      %1600 = vmatpush1.msra.mxu0 0.0
      %1601 = vmatprep.subr.mxu0 0.0
      %1602 = vmatpush1.msra.mxu0 0.0
      %1603 = vmatprep.subr.mxu0 0.0
      %1604 = vmatpush1.msra.mxu0 0.0
      %1605 = vmatprep.subr.mxu0 0.0
      %1606 = vmatpush1.msra.mxu0 0.0
      %1607 = vmatprep.subr.mxu0 0.0
      %1608 = vmatpush1.msra.mxu0 0.0
      %1609 = vmatprep.subr.mxu0 0.0
      %1610 = vmatpush1.msra.mxu0 0.0
      %1611 = vmatprep.subr.mxu0 0.0
      %1612 = vmatpush1.msra.mxu0 0.0
      %1613 = vmatprep.subr.mxu0 0.0
      %1614 = vmatpush1.msra.mxu0 0.0
      %1615 = vmatprep.subr.mxu0 0.0
      %1616 = vmatpush1.msra.mxu0 0.0
      %1617 = vmatprep.subr.mxu0 0.0
      %1618 = vmatpush1.msra.mxu0 0.0
      %1619 = vmatprep.subr.mxu0 0.0
      %1620 = vmatpush1.msra.mxu0 0.0
      %1621 = vmatprep.subr.mxu0 0.0
      %1622 = vmatpush1.msra.mxu0 0.0
      %1623 = vmatprep.subr.mxu0 0.0
      %1624 = vmatpush1.msra.mxu0 0.0
      %1625 = vmatprep.subr.mxu0 0.0
      %1626 = vmatpush1.msra.mxu0 0.0
      %1627 = vmatprep.subr.mxu0 0.0
      %1628 = vmatpush1.msra.mxu0 0.0
      %1629 = vmatprep.subr.mxu0 0.0
      %1630 = vmatpush1.msra.mxu0 0.0
      %1631 = vmatprep.subr.mxu0 0.0
      %1632 = vmatpush1.msra.mxu0 0.0
      %1633 = vmatprep.subr.mxu0 0.0
      %1634 = vmatpush1.msra.mxu0 0.0
      %1635 = vmatprep.subr.mxu0 0.0
      %1636 = vmatpush1.msra.mxu0 0.0
      %1637 = vmatprep.subr.mxu0 0.0
      %1638 = vmatpush1.msra.mxu0 0.0
      %1639 = vmatprep.mubr.f32.mxu0 0.0
      %v1640 = vand.u32 %v1298, 4294901760
      %v1641 = vsub.f32 %v1298, %v1640
      %1642 = vmatmul.mubr.f32.gmra.mrb[0].mxu0 %v1641
      %v1643 = vpop.f32.mrb[0].mxu0
      %v1644 = vadd.f32 %v1534, %v1643
      %v1645 = vpop.f32.mrb[0].mxu0
      %v1646 = vadd.f32 %v1536, %v1645
      %1647 = vmatprep.mubr.f32.mxu0 0.0
      %v1648 = vand.u32 %v1301, 4294901760
      %v1649 = vsub.f32 %v1301, %v1648
      %1650 = vmatmul.mubr.f32.gmra.mrb[0].mxu0 %v1649
      %v1651 = vpop.f32.mrb[0].mxu0
      %v1652 = vadd.f32 %v1541, %v1651
      %v1653 = vpop.f32.mrb[0].mxu0
      %v1654 = vadd.f32 %v1543, %v1653
      %1655 = vmatprep.mubr.f32.mxu0 0.0
      %v1656 = vand.u32 %v1304, 4294901760
      %v1657 = vsub.f32 %v1304, %v1656
      %1658 = vmatmul.mubr.f32.gmra.mrb[0].mxu0 %v1657
      %v1659 = vpop.f32.mrb[0].mxu0
      %v1660 = vadd.f32 %v1548, %v1659
      %v1661 = vpop.f32.mrb[0].mxu0
      %v1662 = vadd.f32 %v1550, %v1661
      %1663 = vmatprep.mubr.f32.mxu0 0.0
      %v1664 = vand.u32 %v1307, 4294901760
      %v1665 = vsub.f32 %v1307, %v1664
      %1666 = vmatmul.mubr.f32.gmra.mrb[0].mxu0 %v1665
      %v1667 = vpop.f32.mrb[0].mxu0
      %v1668 = vadd.f32 %v1555, %v1667
      %v1669 = vpop.f32.mrb[0].mxu0
      %v1670 = vadd.f32 %v1557, %v1669
      %1671 = vdwg.mxu0
      %v1672 = vand.u32 %v1289, 4294901760
      %1673 = vmatprep.subr.mxu0 %v1672
      %v1674 = vand.u32 %v1288, 4294901760
      %1675 = vmatpush1.msra.mxu0 %v1674
      %v1676 = vand.u32 %v1291, 4294901760
      %1677 = vmatprep.subr.mxu0 %v1676
      %v1678 = vand.u32 %v1290, 4294901760
      %1679 = vmatpush1.msra.mxu0 %v1678
      %v1680 = vand.u32 %v1293, 4294901760
      %1681 = vmatprep.subr.mxu0 %v1680
      %v1682 = vand.u32 %v1292, 4294901760
      %1683 = vmatpush1.msra.mxu0 %v1682
      %v1684 = vand.u32 %v1295, 4294901760
      %1685 = vmatprep.subr.mxu0 %v1684
      %v1686 = vand.u32 %v1294, 4294901760
      %1687 = vmatpush1.msra.mxu0 %v1686
      %1688 = vmatprep.subr.mxu0 0.0
      %1689 = vmatpush1.msra.mxu0 0.0
      %1690 = vmatprep.subr.mxu0 0.0
      %1691 = vmatpush1.msra.mxu0 0.0
      %1692 = vmatprep.subr.mxu0 0.0
      %1693 = vmatpush1.msra.mxu0 0.0
      %1694 = vmatprep.subr.mxu0 0.0
      %1695 = vmatpush1.msra.mxu0 0.0
      %1696 = vmatprep.subr.mxu0 0.0
      %1697 = vmatpush1.msra.mxu0 0.0
      %1698 = vmatprep.subr.mxu0 0.0
      %1699 = vmatpush1.msra.mxu0 0.0
      %1700 = vmatprep.subr.mxu0 0.0
      %1701 = vmatpush1.msra.mxu0 0.0
      %1702 = vmatprep.subr.mxu0 0.0
      %1703 = vmatpush1.msra.mxu0 0.0
      %1704 = vmatprep.subr.mxu0 0.0
      %1705 = vmatpush1.msra.mxu0 0.0
      %1706 = vmatprep.subr.mxu0 0.0
      %1707 = vmatpush1.msra.mxu0 0.0
      %1708 = vmatprep.subr.mxu0 0.0
      %1709 = vmatpush1.msra.mxu0 0.0
      %1710 = vmatprep.subr.mxu0 0.0
      %1711 = vmatpush1.msra.mxu0 0.0
      %1712 = vmatprep.subr.mxu0 0.0
      %1713 = vmatpush1.msra.mxu0 0.0
      %1714 = vmatprep.subr.mxu0 0.0
      %1715 = vmatpush1.msra.mxu0 0.0
      %1716 = vmatprep.subr.mxu0 0.0
      %1717 = vmatpush1.msra.mxu0 0.0
      %1718 = vmatprep.subr.mxu0 0.0
      %1719 = vmatpush1.msra.mxu0 0.0
      %1720 = vmatprep.subr.mxu0 0.0
      %1721 = vmatpush1.msra.mxu0 0.0
      %1722 = vmatprep.subr.mxu0 0.0
      %1723 = vmatpush1.msra.mxu0 0.0
      %1724 = vmatprep.subr.mxu0 0.0
      %1725 = vmatpush1.msra.mxu0 0.0
      %1726 = vmatprep.subr.mxu0 0.0
      %1727 = vmatpush1.msra.mxu0 0.0
      %1728 = vmatprep.subr.mxu0 0.0
      %1729 = vmatpush1.msra.mxu0 0.0
      %1730 = vmatprep.subr.mxu0 0.0
      %1731 = vmatpush1.msra.mxu0 0.0
      %1732 = vmatprep.subr.mxu0 0.0
      %1733 = vmatpush1.msra.mxu0 0.0
      %1734 = vmatprep.subr.mxu0 0.0
      %1735 = vmatpush1.msra.mxu0 0.0
      %1736 = vmatprep.subr.mxu0 0.0
      %1737 = vmatpush1.msra.mxu0 0.0
      %1738 = vmatprep.subr.mxu0 0.0
      %1739 = vmatpush1.msra.mxu0 0.0
      %1740 = vmatprep.subr.mxu0 0.0
      %1741 = vmatpush1.msra.mxu0 0.0
      %1742 = vmatprep.subr.mxu0 0.0
      %1743 = vmatpush1.msra.mxu0 0.0
      %1744 = vmatprep.mubr.f32.mxu0 0.0
      %v1745 = vand.u32 %v1298, 4294901760
      %v1746 = vsub.f32 %v1298, %v1745
      %v1747 = vand.u32 %v1746, 4294901760
      %1748 = vmatmul.mubr.f32.gmra.mrb[0].mxu0 %v1747
      %v1749 = vpop.f32.mrb[0].mxu0
      %v1750 = vadd.f32 %v1644, %v1749
      %v1751 = vpop.f32.mrb[0].mxu0
      %v1752 = vadd.f32 %v1646, %v1751
      %1753 = vmatprep.mubr.f32.mxu0 0.0
      %v1754 = vand.u32 %v1301, 4294901760
      %v1755 = vsub.f32 %v1301, %v1754
      %v1756 = vand.u32 %v1755, 4294901760
      %1757 = vmatmul.mubr.f32.gmra.mrb[0].mxu0 %v1756
      %v1758 = vpop.f32.mrb[0].mxu0
      %v1759 = vadd.f32 %v1652, %v1758
      %v1760 = vpop.f32.mrb[0].mxu0
      %v1761 = vadd.f32 %v1654, %v1760
      %1762 = vmatprep.mubr.f32.mxu0 0.0
      %v1763 = vand.u32 %v1304, 4294901760
      %v1764 = vsub.f32 %v1304, %v1763
      %v1765 = vand.u32 %v1764, 4294901760
      %1766 = vmatmul.mubr.f32.gmra.mrb[0].mxu0 %v1765
      %v1767 = vpop.f32.mrb[0].mxu0
      %v1768 = vadd.f32 %v1660, %v1767
      %v1769 = vpop.f32.mrb[0].mxu0
      %v1770 = vadd.f32 %v1662, %v1769
      %1771 = vmatprep.mubr.f32.mxu0 0.0
      %v1772 = vand.u32 %v1307, 4294901760
      %v1773 = vsub.f32 %v1307, %v1772
      %v1774 = vand.u32 %v1773, 4294901760
      %1775 = vmatmul.mubr.f32.gmra.mrb[0].mxu0 %v1774
      %v1776 = vpop.f32.mrb[0].mxu0
      %v1777 = vadd.f32 %v1668, %v1776
      %v1778 = vpop.f32.mrb[0].mxu0
      %v1779 = vadd.f32 %v1670, %v1778
      %1780 = vdwg.mxu0
      %v1781 = vand.u32 %v1289, 4294901760
      %v1782 = vsub.f32 %v1289, %v1781
      %v1783 = vand.u32 %v1782, 4294901760
      %1784 = vmatprep.subr.mxu0 %v1783
      %v1785 = vand.u32 %v1288, 4294901760
      %v1786 = vsub.f32 %v1288, %v1785
      %v1787 = vand.u32 %v1786, 4294901760
      %1788 = vmatpush1.msra.mxu0 %v1787
      %v1789 = vand.u32 %v1291, 4294901760
      %v1790 = vsub.f32 %v1291, %v1789
      %v1791 = vand.u32 %v1790, 4294901760
      %1792 = vmatprep.subr.mxu0 %v1791
      %v1793 = vand.u32 %v1290, 4294901760
      %v1794 = vsub.f32 %v1290, %v1793
      %v1795 = vand.u32 %v1794, 4294901760
      %1796 = vmatpush1.msra.mxu0 %v1795
      %v1797 = vand.u32 %v1293, 4294901760
      %v1798 = vsub.f32 %v1293, %v1797
      %v1799 = vand.u32 %v1798, 4294901760
      %1800 = vmatprep.subr.mxu0 %v1799
      %v1801 = vand.u32 %v1292, 4294901760
      %v1802 = vsub.f32 %v1292, %v1801
      %v1803 = vand.u32 %v1802, 4294901760
      %1804 = vmatpush1.msra.mxu0 %v1803
      %v1805 = vand.u32 %v1295, 4294901760
      %v1806 = vsub.f32 %v1295, %v1805
      %v1807 = vand.u32 %v1806, 4294901760
      %1808 = vmatprep.subr.mxu0 %v1807
      %v1809 = vand.u32 %v1294, 4294901760
      %v1810 = vsub.f32 %v1294, %v1809
      %v1811 = vand.u32 %v1810, 4294901760
      %1812 = vmatpush1.msra.mxu0 %v1811
      %1813 = vmatprep.subr.mxu0 0.0
      %1814 = vmatpush1.msra.mxu0 0.0
      %1815 = vmatprep.subr.mxu0 0.0
      %1816 = vmatpush1.msra.mxu0 0.0
      %1817 = vmatprep.subr.mxu0 0.0
      %1818 = vmatpush1.msra.mxu0 0.0
      %1819 = vmatprep.subr.mxu0 0.0
      %1820 = vmatpush1.msra.mxu0 0.0
      %1821 = vmatprep.subr.mxu0 0.0
      %1822 = vmatpush1.msra.mxu0 0.0
      %1823 = vmatprep.subr.mxu0 0.0
      %1824 = vmatpush1.msra.mxu0 0.0
      %1825 = vmatprep.subr.mxu0 0.0
      %1826 = vmatpush1.msra.mxu0 0.0
      %1827 = vmatprep.subr.mxu0 0.0
      %1828 = vmatpush1.msra.mxu0 0.0
      %1829 = vmatprep.subr.mxu0 0.0
      %1830 = vmatpush1.msra.mxu0 0.0
      %1831 = vmatprep.subr.mxu0 0.0
      %1832 = vmatpush1.msra.mxu0 0.0
      %1833 = vmatprep.subr.mxu0 0.0
      %1834 = vmatpush1.msra.mxu0 0.0
      %1835 = vmatprep.subr.mxu0 0.0
      %1836 = vmatpush1.msra.mxu0 0.0
      %1837 = vmatprep.subr.mxu0 0.0
      %1838 = vmatpush1.msra.mxu0 0.0
      %1839 = vmatprep.subr.mxu0 0.0
      %1840 = vmatpush1.msra.mxu0 0.0
      %1841 = vmatprep.subr.mxu0 0.0
      %1842 = vmatpush1.msra.mxu0 0.0
      %1843 = vmatprep.subr.mxu0 0.0
      %1844 = vmatpush1.msra.mxu0 0.0
      %1845 = vmatprep.subr.mxu0 0.0
      %1846 = vmatpush1.msra.mxu0 0.0
      %1847 = vmatprep.subr.mxu0 0.0
      %1848 = vmatpush1.msra.mxu0 0.0
      %1849 = vmatprep.subr.mxu0 0.0
      %1850 = vmatpush1.msra.mxu0 0.0
      %1851 = vmatprep.subr.mxu0 0.0
      %1852 = vmatpush1.msra.mxu0 0.0
      %1853 = vmatprep.subr.mxu0 0.0
      %1854 = vmatpush1.msra.mxu0 0.0
      %1855 = vmatprep.subr.mxu0 0.0
      %1856 = vmatpush1.msra.mxu0 0.0
      %1857 = vmatprep.subr.mxu0 0.0
      %1858 = vmatpush1.msra.mxu0 0.0
      %1859 = vmatprep.subr.mxu0 0.0
      %1860 = vmatpush1.msra.mxu0 0.0
      %1861 = vmatprep.subr.mxu0 0.0
      %1862 = vmatpush1.msra.mxu0 0.0
      %1863 = vmatprep.subr.mxu0 0.0
      %1864 = vmatpush1.msra.mxu0 0.0
      %1865 = vmatprep.subr.mxu0 0.0
      %1866 = vmatpush1.msra.mxu0 0.0
      %1867 = vmatprep.subr.mxu0 0.0
      %1868 = vmatpush1.msra.mxu0 0.0
      %1869 = vmatprep.mubr.f32.mxu0 0.0
      %v1870 = vand.u32 %v1298, 4294901760
      %1871 = vmatmul.mubr.f32.gmra.mrb[0].mxu0 %v1870
      %v1872 = vpop.f32.mrb[0].mxu0
      %v1873 = vadd.f32 %v1750, %v1872
      %v1874 = vpop.f32.mrb[0].mxu0
      %v1875 = vadd.f32 %v1752, %v1874
      %1876 = vmatprep.mubr.f32.mxu0 0.0
      %v1877 = vand.u32 %v1301, 4294901760
      %1878 = vmatmul.mubr.f32.gmra.mrb[0].mxu0 %v1877
      %v1879 = vpop.f32.mrb[0].mxu0
      %v1880 = vadd.f32 %v1759, %v1879
      %v1881 = vpop.f32.mrb[0].mxu0
      %v1882 = vadd.f32 %v1761, %v1881
      %1883 = vmatprep.mubr.f32.mxu0 0.0
      %v1884 = vand.u32 %v1304, 4294901760
      %1885 = vmatmul.mubr.f32.gmra.mrb[0].mxu0 %v1884
      %v1886 = vpop.f32.mrb[0].mxu0
      %v1887 = vadd.f32 %v1768, %v1886
      %v1888 = vpop.f32.mrb[0].mxu0
      %v1889 = vadd.f32 %v1770, %v1888
      %1890 = vmatprep.mubr.f32.mxu0 0.0
      %v1891 = vand.u32 %v1307, 4294901760
      %1892 = vmatmul.mubr.f32.gmra.mrb[0].mxu0 %v1891
      %v1893 = vpop.f32.mrb[0].mxu0
      %v1894 = vadd.f32 %v1777, %v1893
      %v1895 = vpop.f32.mrb[0].mxu0
      %v1896 = vadd.f32 %v1779, %v1895
      %1897 = vdwg.mxu0
      %v1898 = vand.u32 %v1289, 4294901760
      %1899 = vmatprep.subr.mxu0 %v1898
      %v1900 = vand.u32 %v1288, 4294901760
      %1901 = vmatpush1.msra.mxu0 %v1900
      %v1902 = vand.u32 %v1291, 4294901760
      %1903 = vmatprep.subr.mxu0 %v1902
      %v1904 = vand.u32 %v1290, 4294901760
      %1905 = vmatpush1.msra.mxu0 %v1904
      %v1906 = vand.u32 %v1293, 4294901760
      %1907 = vmatprep.subr.mxu0 %v1906
      %v1908 = vand.u32 %v1292, 4294901760
      %1909 = vmatpush1.msra.mxu0 %v1908
      %v1910 = vand.u32 %v1295, 4294901760
      %1911 = vmatprep.subr.mxu0 %v1910
      %v1912 = vand.u32 %v1294, 4294901760
      %1913 = vmatpush1.msra.mxu0 %v1912
      %1914 = vmatprep.subr.mxu0 0.0
      %1915 = vmatpush1.msra.mxu0 0.0
      %1916 = vmatprep.subr.mxu0 0.0
      %1917 = vmatpush1.msra.mxu0 0.0
      %1918 = vmatprep.subr.mxu0 0.0
      %1919 = vmatpush1.msra.mxu0 0.0
      %1920 = vmatprep.subr.mxu0 0.0
      %1921 = vmatpush1.msra.mxu0 0.0
      %1922 = vmatprep.subr.mxu0 0.0
      %1923 = vmatpush1.msra.mxu0 0.0
      %1924 = vmatprep.subr.mxu0 0.0
      %1925 = vmatpush1.msra.mxu0 0.0
      %1926 = vmatprep.subr.mxu0 0.0
      %1927 = vmatpush1.msra.mxu0 0.0
      %1928 = vmatprep.subr.mxu0 0.0
      %1929 = vmatpush1.msra.mxu0 0.0
      %1930 = vmatprep.subr.mxu0 0.0
      %1931 = vmatpush1.msra.mxu0 0.0
      %1932 = vmatprep.subr.mxu0 0.0
      %1933 = vmatpush1.msra.mxu0 0.0
      %1934 = vmatprep.subr.mxu0 0.0
      %1935 = vmatpush1.msra.mxu0 0.0
      %1936 = vmatprep.subr.mxu0 0.0
      %1937 = vmatpush1.msra.mxu0 0.0
      %1938 = vmatprep.subr.mxu0 0.0
      %1939 = vmatpush1.msra.mxu0 0.0
      %1940 = vmatprep.subr.mxu0 0.0
      %1941 = vmatpush1.msra.mxu0 0.0
      %1942 = vmatprep.subr.mxu0 0.0
      %1943 = vmatpush1.msra.mxu0 0.0
      %1944 = vmatprep.subr.mxu0 0.0
      %1945 = vmatpush1.msra.mxu0 0.0
      %1946 = vmatprep.subr.mxu0 0.0
      %1947 = vmatpush1.msra.mxu0 0.0
      %1948 = vmatprep.subr.mxu0 0.0
      %1949 = vmatpush1.msra.mxu0 0.0
      %1950 = vmatprep.subr.mxu0 0.0
      %1951 = vmatpush1.msra.mxu0 0.0
      %1952 = vmatprep.subr.mxu0 0.0
      %1953 = vmatpush1.msra.mxu0 0.0
      %1954 = vmatprep.subr.mxu0 0.0
      %1955 = vmatpush1.msra.mxu0 0.0
      %1956 = vmatprep.subr.mxu0 0.0
      %1957 = vmatpush1.msra.mxu0 0.0
      %1958 = vmatprep.subr.mxu0 0.0
      %1959 = vmatpush1.msra.mxu0 0.0
      %1960 = vmatprep.subr.mxu0 0.0
      %1961 = vmatpush1.msra.mxu0 0.0
      %1962 = vmatprep.subr.mxu0 0.0
      %1963 = vmatpush1.msra.mxu0 0.0
      %1964 = vmatprep.subr.mxu0 0.0
      %1965 = vmatpush1.msra.mxu0 0.0
      %1966 = vmatprep.subr.mxu0 0.0
      %1967 = vmatpush1.msra.mxu0 0.0
      %1968 = vmatprep.subr.mxu0 0.0
      %1969 = vmatpush1.msra.mxu0 0.0
      %1970 = vmatprep.mubr.f32.mxu0 0.0
      %v1971 = vand.u32 %v1298, 4294901760
      %1972 = vmatmul.mubr.f32.gmra.mrb[0].mxu0 %v1971
      %v1973 = vpop.f32.mrb[0].mxu0
      %v1974 = vadd.f32 %v1873, %v1973
      %v1975 = vpop.f32.mrb[0].mxu0
      %v1976 = vadd.f32 %v1875, %v1975
      %1977 = vmatprep.mubr.f32.mxu0 0.0
      %v1978 = vand.u32 %v1301, 4294901760
      %1979 = vmatmul.mubr.f32.gmra.mrb[0].mxu0 %v1978
      %v1980 = vpop.f32.mrb[0].mxu0
      %v1981 = vadd.f32 %v1880, %v1980
      %v1982 = vpop.f32.mrb[0].mxu0
      %v1983 = vadd.f32 %v1882, %v1982
      %1984 = vmatprep.mubr.f32.mxu0 0.0
      %v1985 = vand.u32 %v1304, 4294901760
      %1986 = vmatmul.mubr.f32.gmra.mrb[0].mxu0 %v1985
      %v1987 = vpop.f32.mrb[0].mxu0
      %v1988 = vadd.f32 %v1887, %v1987
      %v1989 = vpop.f32.mrb[0].mxu0
      %v1990 = vadd.f32 %v1889, %v1989
      %1991 = vmatprep.mubr.f32.mxu0 0.0
      %v1992 = vand.u32 %v1307, 4294901760
      %1993 = vmatmul.mubr.f32.gmra.mrb[0].mxu0 %v1992
      %v1994 = vpop.f32.mrb[0].mxu0
      %v1995 = vadd.f32 %v1894, %v1994
      %v1996 = vpop.f32.mrb[0].mxu0
      %v1997 = vadd.f32 %v1896, %v1996
      %1998 = vdwg.mxu0
      %v1999 = vld [vmem:[%s196] sm:$0xff]
      %v2000 = vld [vmem:[%s196 + $0x10] sm:$0xff]
      %v2001 = vld [vmem:[%s196 + $0x20] sm:$0xff]
      %v2002 = vld [vmem:[%s196 + $0x30] sm:$0xff]
      %v2003 = vmul.f32 %v1999, %v1974
      %v2004 = vmul.f32 %v204, %v1976
      %v2005 = vmul.f32 %v2000, %v1981
      %v2006 = vmul.f32 %v205, %v1983
      %v2007 = vmul.f32 %v2001, %v1988
      %v2008 = vmul.f32 %v206, %v1990
      %v2009 = vmul.f32 %v2002, %v1995
      %v2010 = vmul.f32 %v207, %v1997
      %v2011 = vld [vmem:[%s2] sm:$0xff]
      %v2012 = vld [vmem:[%s2 + $0x8] sm:$0xff]
      %v2013 = vld [vmem:[%s2 + $0x10] sm:$0xff]
      %v2014 = vld [vmem:[%s2 + $0x18] sm:$0xff]
      %v2015 = vld [vmem:[%s2 + $0x20] sm:$0xff]
      %v2016 = vld [vmem:[%s2 + $0x28] sm:$0xff]
      %v2017 = vld [vmem:[%s2 + $0x30] sm:$0xff]
      %v2018 = vld [vmem:[%s2 + $0x38] sm:$0xff]
      %v2019 = vld [vmem:[%s2 + $0x40] sm:$0xff]
      %v2020 = vld [vmem:[%s2 + $0x48] sm:$0xff]
      %v2021 = vld [vmem:[%s2 + $0x50] sm:$0xff]
      %v2022 = vld [vmem:[%s2 + $0x58] sm:$0xff]
      %v2023 = vld [vmem:[%s2 + $0x60] sm:$0xff]
      %v2024 = vld [vmem:[%s2 + $0x68] sm:$0xff]
      %v2025 = vld [vmem:[%s2 + $0x70] sm:$0xff]
      %v2026 = vld [vmem:[%s2 + $0x78] sm:$0xff]
      %v2027 = vld [vmem:[%s2 + $0x80] sm:$0xff]
      %v2028 = vld [vmem:[%s2 + $0x88] sm:$0xff]
      %v2029 = vld [vmem:[%s2 + $0x90] sm:$0xff]
      %v2030 = vld [vmem:[%s2 + $0x98] sm:$0xff]
      %v2031 = vld [vmem:[%s2 + $0xa0] sm:$0xff]
      %v2032 = vld [vmem:[%s2 + $0xa8] sm:$0x7f]
      %vm2033 = vcmask 384000
      %v2035 = vsel %vm2033, %v2004, 0
      %v2038 = vsel %vm2033, %v2006, 0
      %v2041 = vsel %vm2033, %v2008, 0
      %v2044 = vsel %vm2033, %v2010, 0
      %vm2046 = vcmask 1046528
      %v2048 = vsel %vm2046, %v2032, 0
      %2050 = vmatprep.subr.mxu0 0.0
      %v2051 = vand.u32 %v2011, 4294901760
      %2052 = vmatpush1.msra.mxu0 %v2051
      %2053 = vmatprep.subr.mxu0 0.0
      %v2054 = vand.u32 %v2012, 4294901760
      %2055 = vmatpush1.msra.mxu0 %v2054
      %2056 = vmatprep.subr.mxu0 0.0
      %v2057 = vand.u32 %v2013, 4294901760
      %2058 = vmatpush1.msra.mxu0 %v2057
      %2059 = vmatprep.subr.mxu0 0.0
      %v2060 = vand.u32 %v2014, 4294901760
      %2061 = vmatpush1.msra.mxu0 %v2060
      %2062 = vmatprep.subr.mxu0 0.0
      %v2063 = vand.u32 %v2015, 4294901760
      %2064 = vmatpush1.msra.mxu0 %v2063
      %2065 = vmatprep.subr.mxu0 0.0
      %v2066 = vand.u32 %v2016, 4294901760
      %2067 = vmatpush1.msra.mxu0 %v2066
      %2068 = vmatprep.subr.mxu0 0.0
      %v2069 = vand.u32 %v2017, 4294901760
      %2070 = vmatpush1.msra.mxu0 %v2069
      %2071 = vmatprep.subr.mxu0 0.0
      %v2072 = vand.u32 %v2018, 4294901760
      %2073 = vmatpush1.msra.mxu0 %v2072
      %2074 = vmatprep.subr.mxu0 0.0
      %v2075 = vand.u32 %v2019, 4294901760
      %2076 = vmatpush1.msra.mxu0 %v2075
      %2077 = vmatprep.subr.mxu0 0.0
      %v2078 = vand.u32 %v2020, 4294901760
      %2079 = vmatpush1.msra.mxu0 %v2078
      %2080 = vmatprep.subr.mxu0 0.0
      %v2081 = vand.u32 %v2021, 4294901760
      %2082 = vmatpush1.msra.mxu0 %v2081
      %2083 = vmatprep.subr.mxu0 0.0
      %v2084 = vand.u32 %v2022, 4294901760
      %2085 = vmatpush1.msra.mxu0 %v2084
      %2086 = vmatprep.subr.mxu0 0.0
      %v2087 = vand.u32 %v2023, 4294901760
      %2088 = vmatpush1.msra.mxu0 %v2087
      %2089 = vmatprep.subr.mxu0 0.0
      %v2090 = vand.u32 %v2024, 4294901760
      %2091 = vmatpush1.msra.mxu0 %v2090
      %2092 = vmatprep.subr.mxu0 0.0
      %v2093 = vand.u32 %v2025, 4294901760
      %2094 = vmatpush1.msra.mxu0 %v2093
      %2095 = vmatprep.subr.mxu0 0.0
      %v2096 = vand.u32 %v2026, 4294901760
      %2097 = vmatpush1.msra.mxu0 %v2096
      %2098 = vmatprep.subr.mxu0 0.0
      %v2099 = vand.u32 %v2027, 4294901760
      %2100 = vmatpush1.msra.mxu0 %v2099
      %2101 = vmatprep.subr.mxu0 0.0
      %v2102 = vand.u32 %v2028, 4294901760
      %2103 = vmatpush1.msra.mxu0 %v2102
      %2104 = vmatprep.subr.mxu0 0.0
      %v2105 = vand.u32 %v2029, 4294901760
      %2106 = vmatpush1.msra.mxu0 %v2105
      %2107 = vmatprep.subr.mxu0 0.0
      %v2108 = vand.u32 %v2030, 4294901760
      %2109 = vmatpush1.msra.mxu0 %v2108
      %2110 = vmatprep.subr.mxu0 0.0
      %v2111 = vand.u32 %v2031, 4294901760
      %2112 = vmatpush1.msra.mxu0 %v2111
      %2113 = vmatprep.subr.mxu0 0.0
      %v2114 = vand.u32 %v2048, 4294901760
      %2115 = vmatpush1.msra.mxu0 %v2114
      %2116 = vmatprep.subr.mxu0 0.0
      %2117 = vmatpush1.msra.mxu0 0.0
      %2118 = vmatprep.subr.mxu0 0.0
      %2119 = vmatpush1.msra.mxu0 0.0
      %2120 = vmatprep.subr.mxu0 0.0
      %2121 = vmatpush1.msra.mxu0 0.0
      %2122 = vmatprep.subr.mxu0 0.0
      %2123 = vmatpush1.msra.mxu0 0.0
      %2124 = vmatprep.subr.mxu0 0.0
      %2125 = vmatpush1.msra.mxu0 0.0
      %2126 = vmatprep.subr.mxu0 0.0
      %2127 = vmatpush1.msra.mxu0 0.0
      %2128 = vmatprep.subr.mxu0 0.0
      %2129 = vmatpush1.msra.mxu0 0.0
      %2130 = vmatprep.subr.mxu0 0.0
      %2131 = vmatpush1.msra.mxu0 0.0
      %2132 = vmatprep.subr.mxu0 0.0
      %2133 = vmatpush1.msra.mxu0 0.0
      %2134 = vmatprep.subr.mxu0 0.0
      %2135 = vmatpush1.msra.mxu0 0.0
      %v2136 = vand.u32 %v2035, 4294901760
      %v2137 = vsub.f32 %v2035, %v2136
      %v2138 = vand.u32 %v2137, 4294901760
      %v2139 = vsub.f32 %v2137, %v2138
      %v2140 = vand.u32 %v2139, 4294901760
      %2141 = vmatprep.mubr.f32.mxu0 %v2140
      %v2142 = vand.u32 %v2003, 4294901760
      %v2143 = vsub.f32 %v2003, %v2142
      %v2144 = vand.u32 %v2143, 4294901760
      %v2145 = vsub.f32 %v2143, %v2144
      %v2146 = vand.u32 %v2145, 4294901760
      %2147 = vmatmul.mubr.f32.gmra.mrb[0].mxu0 %v2146
      %v2148 = vpop.f32.mrb[0].mxu0
      %v2149 = vadd.f32 0.0, %v2148
      %v2150 = vpop.f32.mrb[0].mxu0
      %v2151 = vand.u32 %v2038, 4294901760
      %v2152 = vsub.f32 %v2038, %v2151
      %v2153 = vand.u32 %v2152, 4294901760
      %v2154 = vsub.f32 %v2152, %v2153
      %v2155 = vand.u32 %v2154, 4294901760
      %2156 = vmatprep.mubr.f32.mxu0 %v2155
      %v2157 = vand.u32 %v2005, 4294901760
      %v2158 = vsub.f32 %v2005, %v2157
      %v2159 = vand.u32 %v2158, 4294901760
      %v2160 = vsub.f32 %v2158, %v2159
      %v2161 = vand.u32 %v2160, 4294901760
      %2162 = vmatmul.mubr.f32.gmra.mrb[0].mxu0 %v2161
      %v2163 = vpop.f32.mrb[0].mxu0
      %v2164 = vadd.f32 0.0, %v2163
      %v2165 = vpop.f32.mrb[0].mxu0
      %v2166 = vand.u32 %v2041, 4294901760
      %v2167 = vsub.f32 %v2041, %v2166
      %v2168 = vand.u32 %v2167, 4294901760
      %v2169 = vsub.f32 %v2167, %v2168
      %v2170 = vand.u32 %v2169, 4294901760
      %2171 = vmatprep.mubr.f32.mxu0 %v2170
      %v2172 = vand.u32 %v2007, 4294901760
      %v2173 = vsub.f32 %v2007, %v2172
      %v2174 = vand.u32 %v2173, 4294901760
      %v2175 = vsub.f32 %v2173, %v2174
      %v2176 = vand.u32 %v2175, 4294901760
      %2177 = vmatmul.mubr.f32.gmra.mrb[0].mxu0 %v2176
      %v2178 = vpop.f32.mrb[0].mxu0
      %v2179 = vadd.f32 0.0, %v2178
      %v2180 = vpop.f32.mrb[0].mxu0
      %v2181 = vand.u32 %v2044, 4294901760
      %v2182 = vsub.f32 %v2044, %v2181
      %v2183 = vand.u32 %v2182, 4294901760
      %v2184 = vsub.f32 %v2182, %v2183
      %v2185 = vand.u32 %v2184, 4294901760
      %2186 = vmatprep.mubr.f32.mxu0 %v2185
      %v2187 = vand.u32 %v2009, 4294901760
      %v2188 = vsub.f32 %v2009, %v2187
      %v2189 = vand.u32 %v2188, 4294901760
      %v2190 = vsub.f32 %v2188, %v2189
      %v2191 = vand.u32 %v2190, 4294901760
      %2192 = vmatmul.mubr.f32.gmra.mrb[0].mxu0 %v2191
      %v2193 = vpop.f32.mrb[0].mxu0
      %v2194 = vadd.f32 0.0, %v2193
      %v2195 = vpop.f32.mrb[0].mxu0
      %2196 = vdwg.mxu0
      %2197 = vmatprep.subr.mxu0 0.0
      %v2198 = vand.u32 %v2011, 4294901760
      %v2199 = vsub.f32 %v2011, %v2198
      %v2200 = vand.u32 %v2199, 4294901760
      %v2201 = vsub.f32 %v2199, %v2200
      %v2202 = vand.u32 %v2201, 4294901760
      %2203 = vmatpush1.msra.mxu0 %v2202
      %2204 = vmatprep.subr.mxu0 0.0
      %v2205 = vand.u32 %v2012, 4294901760
      %v2206 = vsub.f32 %v2012, %v2205
      %v2207 = vand.u32 %v2206, 4294901760
      %v2208 = vsub.f32 %v2206, %v2207
      %v2209 = vand.u32 %v2208, 4294901760
      %2210 = vmatpush1.msra.mxu0 %v2209
      %2211 = vmatprep.subr.mxu0 0.0
      %v2212 = vand.u32 %v2013, 4294901760
      %v2213 = vsub.f32 %v2013, %v2212
      %v2214 = vand.u32 %v2213, 4294901760
      %v2215 = vsub.f32 %v2213, %v2214
      %v2216 = vand.u32 %v2215, 4294901760
      %2217 = vmatpush1.msra.mxu0 %v2216
      %2218 = vmatprep.subr.mxu0 0.0
      %v2219 = vand.u32 %v2014, 4294901760
      %v2220 = vsub.f32 %v2014, %v2219
      %v2221 = vand.u32 %v2220, 4294901760
      %v2222 = vsub.f32 %v2220, %v2221
      %v2223 = vand.u32 %v2222, 4294901760
      %2224 = vmatpush1.msra.mxu0 %v2223
      %2225 = vmatprep.subr.mxu0 0.0
      %v2226 = vand.u32 %v2015, 4294901760
      %v2227 = vsub.f32 %v2015, %v2226
      %v2228 = vand.u32 %v2227, 4294901760
      %v2229 = vsub.f32 %v2227, %v2228
      %v2230 = vand.u32 %v2229, 4294901760
      %2231 = vmatpush1.msra.mxu0 %v2230
      %2232 = vmatprep.subr.mxu0 0.0
      %v2233 = vand.u32 %v2016, 4294901760
      %v2234 = vsub.f32 %v2016, %v2233
      %v2235 = vand.u32 %v2234, 4294901760
      %v2236 = vsub.f32 %v2234, %v2235
      %v2237 = vand.u32 %v2236, 4294901760
      %2238 = vmatpush1.msra.mxu0 %v2237
      %2239 = vmatprep.subr.mxu0 0.0
      %v2240 = vand.u32 %v2017, 4294901760
      %v2241 = vsub.f32 %v2017, %v2240
      %v2242 = vand.u32 %v2241, 4294901760
      %v2243 = vsub.f32 %v2241, %v2242
      %v2244 = vand.u32 %v2243, 4294901760
      %2245 = vmatpush1.msra.mxu0 %v2244
      %2246 = vmatprep.subr.mxu0 0.0
      %v2247 = vand.u32 %v2018, 4294901760
      %v2248 = vsub.f32 %v2018, %v2247
      %v2249 = vand.u32 %v2248, 4294901760
      %v2250 = vsub.f32 %v2248, %v2249
      %v2251 = vand.u32 %v2250, 4294901760
      %2252 = vmatpush1.msra.mxu0 %v2251
      %2253 = vmatprep.subr.mxu0 0.0
      %v2254 = vand.u32 %v2019, 4294901760
      %v2255 = vsub.f32 %v2019, %v2254
      %v2256 = vand.u32 %v2255, 4294901760
      %v2257 = vsub.f32 %v2255, %v2256
      %v2258 = vand.u32 %v2257, 4294901760
      %2259 = vmatpush1.msra.mxu0 %v2258
      %2260 = vmatprep.subr.mxu0 0.0
      %v2261 = vand.u32 %v2020, 4294901760
      %v2262 = vsub.f32 %v2020, %v2261
      %v2263 = vand.u32 %v2262, 4294901760
      %v2264 = vsub.f32 %v2262, %v2263
      %v2265 = vand.u32 %v2264, 4294901760
      %2266 = vmatpush1.msra.mxu0 %v2265
      %2267 = vmatprep.subr.mxu0 0.0
      %v2268 = vand.u32 %v2021, 4294901760
      %v2269 = vsub.f32 %v2021, %v2268
      %v2270 = vand.u32 %v2269, 4294901760
      %v2271 = vsub.f32 %v2269, %v2270
      %v2272 = vand.u32 %v2271, 4294901760
      %2273 = vmatpush1.msra.mxu0 %v2272
      %2274 = vmatprep.subr.mxu0 0.0
      %v2275 = vand.u32 %v2022, 4294901760
      %v2276 = vsub.f32 %v2022, %v2275
      %v2277 = vand.u32 %v2276, 4294901760
      %v2278 = vsub.f32 %v2276, %v2277
      %v2279 = vand.u32 %v2278, 4294901760
      %2280 = vmatpush1.msra.mxu0 %v2279
      %2281 = vmatprep.subr.mxu0 0.0
      %v2282 = vand.u32 %v2023, 4294901760
      %v2283 = vsub.f32 %v2023, %v2282
      %v2284 = vand.u32 %v2283, 4294901760
      %v2285 = vsub.f32 %v2283, %v2284
      %v2286 = vand.u32 %v2285, 4294901760
      %2287 = vmatpush1.msra.mxu0 %v2286
      %2288 = vmatprep.subr.mxu0 0.0
      %v2289 = vand.u32 %v2024, 4294901760
      %v2290 = vsub.f32 %v2024, %v2289
      %v2291 = vand.u32 %v2290, 4294901760
      %v2292 = vsub.f32 %v2290, %v2291
      %v2293 = vand.u32 %v2292, 4294901760
      %2294 = vmatpush1.msra.mxu0 %v2293
      %2295 = vmatprep.subr.mxu0 0.0
      %v2296 = vand.u32 %v2025, 4294901760
      %v2297 = vsub.f32 %v2025, %v2296
      %v2298 = vand.u32 %v2297, 4294901760
      %v2299 = vsub.f32 %v2297, %v2298
      %v2300 = vand.u32 %v2299, 4294901760
      %2301 = vmatpush1.msra.mxu0 %v2300
      %2302 = vmatprep.subr.mxu0 0.0
      %v2303 = vand.u32 %v2026, 4294901760
      %v2304 = vsub.f32 %v2026, %v2303
      %v2305 = vand.u32 %v2304, 4294901760
      %v2306 = vsub.f32 %v2304, %v2305
      %v2307 = vand.u32 %v2306, 4294901760
      %2308 = vmatpush1.msra.mxu0 %v2307
      %2309 = vmatprep.subr.mxu0 0.0
      %v2310 = vand.u32 %v2027, 4294901760
      %v2311 = vsub.f32 %v2027, %v2310
      %v2312 = vand.u32 %v2311, 4294901760
      %v2313 = vsub.f32 %v2311, %v2312
      %v2314 = vand.u32 %v2313, 4294901760
      %2315 = vmatpush1.msra.mxu0 %v2314
      %2316 = vmatprep.subr.mxu0 0.0
      %v2317 = vand.u32 %v2028, 4294901760
      %v2318 = vsub.f32 %v2028, %v2317
      %v2319 = vand.u32 %v2318, 4294901760
      %v2320 = vsub.f32 %v2318, %v2319
      %v2321 = vand.u32 %v2320, 4294901760
      %2322 = vmatpush1.msra.mxu0 %v2321
      %2323 = vmatprep.subr.mxu0 0.0
      %v2324 = vand.u32 %v2029, 4294901760
      %v2325 = vsub.f32 %v2029, %v2324
      %v2326 = vand.u32 %v2325, 4294901760
      %v2327 = vsub.f32 %v2325, %v2326
      %v2328 = vand.u32 %v2327, 4294901760
      %2329 = vmatpush1.msra.mxu0 %v2328
      %2330 = vmatprep.subr.mxu0 0.0
      %v2331 = vand.u32 %v2030, 4294901760
      %v2332 = vsub.f32 %v2030, %v2331
      %v2333 = vand.u32 %v2332, 4294901760
      %v2334 = vsub.f32 %v2332, %v2333
      %v2335 = vand.u32 %v2334, 4294901760
      %2336 = vmatpush1.msra.mxu0 %v2335
      %2337 = vmatprep.subr.mxu0 0.0
      %v2338 = vand.u32 %v2031, 4294901760
      %v2339 = vsub.f32 %v2031, %v2338
      %v2340 = vand.u32 %v2339, 4294901760
      %v2341 = vsub.f32 %v2339, %v2340
      %v2342 = vand.u32 %v2341, 4294901760
      %2343 = vmatpush1.msra.mxu0 %v2342
      %2344 = vmatprep.subr.mxu0 0.0
      %v2345 = vand.u32 %v2048, 4294901760
      %v2346 = vsub.f32 %v2048, %v2345
      %v2347 = vand.u32 %v2346, 4294901760
      %v2348 = vsub.f32 %v2346, %v2347
      %v2349 = vand.u32 %v2348, 4294901760
      %2350 = vmatpush1.msra.mxu0 %v2349
      %2351 = vmatprep.subr.mxu0 0.0
      %2352 = vmatpush1.msra.mxu0 0.0
      %2353 = vmatprep.subr.mxu0 0.0
      %2354 = vmatpush1.msra.mxu0 0.0
      %2355 = vmatprep.subr.mxu0 0.0
      %2356 = vmatpush1.msra.mxu0 0.0
      %2357 = vmatprep.subr.mxu0 0.0
      %2358 = vmatpush1.msra.mxu0 0.0
      %2359 = vmatprep.subr.mxu0 0.0
      %2360 = vmatpush1.msra.mxu0 0.0
      %2361 = vmatprep.subr.mxu0 0.0
      %2362 = vmatpush1.msra.mxu0 0.0
      %2363 = vmatprep.subr.mxu0 0.0
      %2364 = vmatpush1.msra.mxu0 0.0
      %2365 = vmatprep.subr.mxu0 0.0
      %2366 = vmatpush1.msra.mxu0 0.0
      %2367 = vmatprep.subr.mxu0 0.0
      %2368 = vmatpush1.msra.mxu0 0.0
      %2369 = vmatprep.subr.mxu0 0.0
      %2370 = vmatpush1.msra.mxu0 0.0
      %v2371 = vand.u32 %v2035, 4294901760
      %2372 = vmatprep.mubr.f32.mxu0 %v2371
      %v2373 = vand.u32 %v2003, 4294901760
      %2374 = vmatmul.mubr.f32.gmra.mrb[0].mxu0 %v2373
      %v2375 = vpop.f32.mrb[0].mxu0
      %v2376 = vadd.f32 %v2149, %v2375
      %v2377 = vpop.f32.mrb[0].mxu0
      %v2378 = vand.u32 %v2038, 4294901760
      %2379 = vmatprep.mubr.f32.mxu0 %v2378
      %v2380 = vand.u32 %v2005, 4294901760
      %2381 = vmatmul.mubr.f32.gmra.mrb[0].mxu0 %v2380
      %v2382 = vpop.f32.mrb[0].mxu0
      %v2383 = vadd.f32 %v2164, %v2382
      %v2384 = vpop.f32.mrb[0].mxu0
      %v2385 = vand.u32 %v2041, 4294901760
      %2386 = vmatprep.mubr.f32.mxu0 %v2385
      %v2387 = vand.u32 %v2007, 4294901760
      %2388 = vmatmul.mubr.f32.gmra.mrb[0].mxu0 %v2387
      %v2389 = vpop.f32.mrb[0].mxu0
      %v2390 = vadd.f32 %v2179, %v2389
      %v2391 = vpop.f32.mrb[0].mxu0
      %v2392 = vand.u32 %v2044, 4294901760
      %2393 = vmatprep.mubr.f32.mxu0 %v2392
      %v2394 = vand.u32 %v2009, 4294901760
      %2395 = vmatmul.mubr.f32.gmra.mrb[0].mxu0 %v2394
      %v2396 = vpop.f32.mrb[0].mxu0
      %v2397 = vadd.f32 %v2194, %v2396
      %v2398 = vpop.f32.mrb[0].mxu0
      %2399 = vdwg.mxu0
      %2400 = vmatprep.subr.mxu0 0.0
      %v2401 = vand.u32 %v2011, 4294901760
      %v2402 = vsub.f32 %v2011, %v2401
      %2403 = vmatpush1.msra.mxu0 %v2402
      %2404 = vmatprep.subr.mxu0 0.0
      %v2405 = vand.u32 %v2012, 4294901760
      %v2406 = vsub.f32 %v2012, %v2405
      %2407 = vmatpush1.msra.mxu0 %v2406
      %2408 = vmatprep.subr.mxu0 0.0
      %v2409 = vand.u32 %v2013, 4294901760
      %v2410 = vsub.f32 %v2013, %v2409
      %2411 = vmatpush1.msra.mxu0 %v2410
      %2412 = vmatprep.subr.mxu0 0.0
      %v2413 = vand.u32 %v2014, 4294901760
      %v2414 = vsub.f32 %v2014, %v2413
      %2415 = vmatpush1.msra.mxu0 %v2414
      %2416 = vmatprep.subr.mxu0 0.0
      %v2417 = vand.u32 %v2015, 4294901760
      %v2418 = vsub.f32 %v2015, %v2417
      %2419 = vmatpush1.msra.mxu0 %v2418
      %2420 = vmatprep.subr.mxu0 0.0
      %v2421 = vand.u32 %v2016, 4294901760
      %v2422 = vsub.f32 %v2016, %v2421
      %2423 = vmatpush1.msra.mxu0 %v2422
      %2424 = vmatprep.subr.mxu0 0.0
      %v2425 = vand.u32 %v2017, 4294901760
      %v2426 = vsub.f32 %v2017, %v2425
      %2427 = vmatpush1.msra.mxu0 %v2426
      %2428 = vmatprep.subr.mxu0 0.0
      %v2429 = vand.u32 %v2018, 4294901760
      %v2430 = vsub.f32 %v2018, %v2429
      %2431 = vmatpush1.msra.mxu0 %v2430
      %2432 = vmatprep.subr.mxu0 0.0
      %v2433 = vand.u32 %v2019, 4294901760
      %v2434 = vsub.f32 %v2019, %v2433
      %2435 = vmatpush1.msra.mxu0 %v2434
      %2436 = vmatprep.subr.mxu0 0.0
      %v2437 = vand.u32 %v2020, 4294901760
      %v2438 = vsub.f32 %v2020, %v2437
      %2439 = vmatpush1.msra.mxu0 %v2438
      %2440 = vmatprep.subr.mxu0 0.0
      %v2441 = vand.u32 %v2021, 4294901760
      %v2442 = vsub.f32 %v2021, %v2441
      %2443 = vmatpush1.msra.mxu0 %v2442
      %2444 = vmatprep.subr.mxu0 0.0
      %v2445 = vand.u32 %v2022, 4294901760
      %v2446 = vsub.f32 %v2022, %v2445
      %2447 = vmatpush1.msra.mxu0 %v2446
      %2448 = vmatprep.subr.mxu0 0.0
      %v2449 = vand.u32 %v2023, 4294901760
      %v2450 = vsub.f32 %v2023, %v2449
      %2451 = vmatpush1.msra.mxu0 %v2450
      %2452 = vmatprep.subr.mxu0 0.0
      %v2453 = vand.u32 %v2024, 4294901760
      %v2454 = vsub.f32 %v2024, %v2453
      %2455 = vmatpush1.msra.mxu0 %v2454
      %2456 = vmatprep.subr.mxu0 0.0
      %v2457 = vand.u32 %v2025, 4294901760
      %v2458 = vsub.f32 %v2025, %v2457
      %2459 = vmatpush1.msra.mxu0 %v2458
      %2460 = vmatprep.subr.mxu0 0.0
      %v2461 = vand.u32 %v2026, 4294901760
      %v2462 = vsub.f32 %v2026, %v2461
      %2463 = vmatpush1.msra.mxu0 %v2462
      %2464 = vmatprep.subr.mxu0 0.0
      %v2465 = vand.u32 %v2027, 4294901760
      %v2466 = vsub.f32 %v2027, %v2465
      %2467 = vmatpush1.msra.mxu0 %v2466
      %2468 = vmatprep.subr.mxu0 0.0
      %v2469 = vand.u32 %v2028, 4294901760
      %v2470 = vsub.f32 %v2028, %v2469
      %2471 = vmatpush1.msra.mxu0 %v2470
      %2472 = vmatprep.subr.mxu0 0.0
      %v2473 = vand.u32 %v2029, 4294901760
      %v2474 = vsub.f32 %v2029, %v2473
      %2475 = vmatpush1.msra.mxu0 %v2474
      %2476 = vmatprep.subr.mxu0 0.0
      %v2477 = vand.u32 %v2030, 4294901760
      %v2478 = vsub.f32 %v2030, %v2477
      %2479 = vmatpush1.msra.mxu0 %v2478
      %2480 = vmatprep.subr.mxu0 0.0
      %v2481 = vand.u32 %v2031, 4294901760
      %v2482 = vsub.f32 %v2031, %v2481
      %2483 = vmatpush1.msra.mxu0 %v2482
      %2484 = vmatprep.subr.mxu0 0.0
      %v2485 = vand.u32 %v2048, 4294901760
      %v2486 = vsub.f32 %v2048, %v2485
      %2487 = vmatpush1.msra.mxu0 %v2486
      %2488 = vmatprep.subr.mxu0 0.0
      %2489 = vmatpush1.msra.mxu0 0.0
      %2490 = vmatprep.subr.mxu0 0.0
      %2491 = vmatpush1.msra.mxu0 0.0
      %2492 = vmatprep.subr.mxu0 0.0
      %2493 = vmatpush1.msra.mxu0 0.0
      %2494 = vmatprep.subr.mxu0 0.0
      %2495 = vmatpush1.msra.mxu0 0.0
      %2496 = vmatprep.subr.mxu0 0.0
      %2497 = vmatpush1.msra.mxu0 0.0
      %2498 = vmatprep.subr.mxu0 0.0
      %2499 = vmatpush1.msra.mxu0 0.0
      %2500 = vmatprep.subr.mxu0 0.0
      %2501 = vmatpush1.msra.mxu0 0.0
      %2502 = vmatprep.subr.mxu0 0.0
      %2503 = vmatpush1.msra.mxu0 0.0
      %2504 = vmatprep.subr.mxu0 0.0
      %2505 = vmatpush1.msra.mxu0 0.0
      %2506 = vmatprep.subr.mxu0 0.0
      %2507 = vmatpush1.msra.mxu0 0.0
      %v2508 = vand.u32 %v2035, 4294901760
      %v2509 = vsub.f32 %v2035, %v2508
      %2510 = vmatprep.mubr.f32.mxu0 %v2509
      %v2511 = vand.u32 %v2003, 4294901760
      %v2512 = vsub.f32 %v2003, %v2511
      %2513 = vmatmul.mubr.f32.gmra.mrb[0].mxu0 %v2512
      %v2514 = vpop.f32.mrb[0].mxu0
      %v2515 = vadd.f32 %v2376, %v2514
      %v2516 = vpop.f32.mrb[0].mxu0
      %v2517 = vand.u32 %v2038, 4294901760
      %v2518 = vsub.f32 %v2038, %v2517
      %2519 = vmatprep.mubr.f32.mxu0 %v2518
      %v2520 = vand.u32 %v2005, 4294901760
      %v2521 = vsub.f32 %v2005, %v2520
      %2522 = vmatmul.mubr.f32.gmra.mrb[0].mxu0 %v2521
      %v2523 = vpop.f32.mrb[0].mxu0
      %v2524 = vadd.f32 %v2383, %v2523
      %v2525 = vpop.f32.mrb[0].mxu0
      %v2526 = vand.u32 %v2041, 4294901760
      %v2527 = vsub.f32 %v2041, %v2526
      %2528 = vmatprep.mubr.f32.mxu0 %v2527
      %v2529 = vand.u32 %v2007, 4294901760
      %v2530 = vsub.f32 %v2007, %v2529
      %2531 = vmatmul.mubr.f32.gmra.mrb[0].mxu0 %v2530
      %v2532 = vpop.f32.mrb[0].mxu0
      %v2533 = vadd.f32 %v2390, %v2532
      %v2534 = vpop.f32.mrb[0].mxu0
      %v2535 = vand.u32 %v2044, 4294901760
      %v2536 = vsub.f32 %v2044, %v2535
      %2537 = vmatprep.mubr.f32.mxu0 %v2536
      %v2538 = vand.u32 %v2009, 4294901760
      %v2539 = vsub.f32 %v2009, %v2538
      %2540 = vmatmul.mubr.f32.gmra.mrb[0].mxu0 %v2539
      %v2541 = vpop.f32.mrb[0].mxu0
      %v2542 = vadd.f32 %v2397, %v2541
      %v2543 = vpop.f32.mrb[0].mxu0
      %2544 = vdwg.mxu0
      %2545 = vmatprep.subr.mxu0 0.0
      %v2546 = vand.u32 %v2011, 4294901760
      %2547 = vmatpush1.msra.mxu0 %v2546
      %2548 = vmatprep.subr.mxu0 0.0
      %v2549 = vand.u32 %v2012, 4294901760
      %2550 = vmatpush1.msra.mxu0 %v2549
      %2551 = vmatprep.subr.mxu0 0.0
      %v2552 = vand.u32 %v2013, 4294901760
      %2553 = vmatpush1.msra.mxu0 %v2552
      %2554 = vmatprep.subr.mxu0 0.0
      %v2555 = vand.u32 %v2014, 4294901760
      %2556 = vmatpush1.msra.mxu0 %v2555
      %2557 = vmatprep.subr.mxu0 0.0
      %v2558 = vand.u32 %v2015, 4294901760
      %2559 = vmatpush1.msra.mxu0 %v2558
      %2560 = vmatprep.subr.mxu0 0.0
      %v2561 = vand.u32 %v2016, 4294901760
      %2562 = vmatpush1.msra.mxu0 %v2561
      %2563 = vmatprep.subr.mxu0 0.0
      %v2564 = vand.u32 %v2017, 4294901760
      %2565 = vmatpush1.msra.mxu0 %v2564
      %2566 = vmatprep.subr.mxu0 0.0
      %v2567 = vand.u32 %v2018, 4294901760
      %2568 = vmatpush1.msra.mxu0 %v2567
      %2569 = vmatprep.subr.mxu0 0.0
      %v2570 = vand.u32 %v2019, 4294901760
      %2571 = vmatpush1.msra.mxu0 %v2570
      %2572 = vmatprep.subr.mxu0 0.0
      %v2573 = vand.u32 %v2020, 4294901760
      %2574 = vmatpush1.msra.mxu0 %v2573
      %2575 = vmatprep.subr.mxu0 0.0
      %v2576 = vand.u32 %v2021, 4294901760
      %2577 = vmatpush1.msra.mxu0 %v2576
      %2578 = vmatprep.subr.mxu0 0.0
      %v2579 = vand.u32 %v2022, 4294901760
      %2580 = vmatpush1.msra.mxu0 %v2579
      %2581 = vmatprep.subr.mxu0 0.0
      %v2582 = vand.u32 %v2023, 4294901760
      %2583 = vmatpush1.msra.mxu0 %v2582
      %2584 = vmatprep.subr.mxu0 0.0
      %v2585 = vand.u32 %v2024, 4294901760
      %2586 = vmatpush1.msra.mxu0 %v2585
      %2587 = vmatprep.subr.mxu0 0.0
      %v2588 = vand.u32 %v2025, 4294901760
      %2589 = vmatpush1.msra.mxu0 %v2588
      %2590 = vmatprep.subr.mxu0 0.0
      %v2591 = vand.u32 %v2026, 4294901760
      %2592 = vmatpush1.msra.mxu0 %v2591
      %2593 = vmatprep.subr.mxu0 0.0
      %v2594 = vand.u32 %v2027, 4294901760
      %2595 = vmatpush1.msra.mxu0 %v2594
      %2596 = vmatprep.subr.mxu0 0.0
      %v2597 = vand.u32 %v2028, 4294901760
      %2598 = vmatpush1.msra.mxu0 %v2597
      %2599 = vmatprep.subr.mxu0 0.0
      %v2600 = vand.u32 %v2029, 4294901760
      %2601 = vmatpush1.msra.mxu0 %v2600
      %2602 = vmatprep.subr.mxu0 0.0
      %v2603 = vand.u32 %v2030, 4294901760
      %2604 = vmatpush1.msra.mxu0 %v2603
      %2605 = vmatprep.subr.mxu0 0.0
      %v2606 = vand.u32 %v2031, 4294901760
      %2607 = vmatpush1.msra.mxu0 %v2606
      %2608 = vmatprep.subr.mxu0 0.0
      %v2609 = vand.u32 %v2048, 4294901760
      %2610 = vmatpush1.msra.mxu0 %v2609
      %2611 = vmatprep.subr.mxu0 0.0
      %2612 = vmatpush1.msra.mxu0 0.0
      %2613 = vmatprep.subr.mxu0 0.0
      %2614 = vmatpush1.msra.mxu0 0.0
      %2615 = vmatprep.subr.mxu0 0.0
      %2616 = vmatpush1.msra.mxu0 0.0
      %2617 = vmatprep.subr.mxu0 0.0
      %2618 = vmatpush1.msra.mxu0 0.0
      %2619 = vmatprep.subr.mxu0 0.0
      %2620 = vmatpush1.msra.mxu0 0.0
      %2621 = vmatprep.subr.mxu0 0.0
      %2622 = vmatpush1.msra.mxu0 0.0
      %2623 = vmatprep.subr.mxu0 0.0
      %2624 = vmatpush1.msra.mxu0 0.0
      %2625 = vmatprep.subr.mxu0 0.0
      %2626 = vmatpush1.msra.mxu0 0.0
      %2627 = vmatprep.subr.mxu0 0.0
      %2628 = vmatpush1.msra.mxu0 0.0
      %2629 = vmatprep.subr.mxu0 0.0
      %2630 = vmatpush1.msra.mxu0 0.0
      %v2631 = vand.u32 %v2035, 4294901760
      %v2632 = vsub.f32 %v2035, %v2631
      %v2633 = vand.u32 %v2632, 4294901760
      %2634 = vmatprep.mubr.f32.mxu0 %v2633
      %v2635 = vand.u32 %v2003, 4294901760
      %v2636 = vsub.f32 %v2003, %v2635
      %v2637 = vand.u32 %v2636, 4294901760
      %2638 = vmatmul.mubr.f32.gmra.mrb[0].mxu0 %v2637
      %v2639 = vpop.f32.mrb[0].mxu0
      %v2640 = vadd.f32 %v2515, %v2639
      %v2641 = vpop.f32.mrb[0].mxu0
      %v2642 = vand.u32 %v2038, 4294901760
      %v2643 = vsub.f32 %v2038, %v2642
      %v2644 = vand.u32 %v2643, 4294901760
      %2645 = vmatprep.mubr.f32.mxu0 %v2644
      %v2646 = vand.u32 %v2005, 4294901760
      %v2647 = vsub.f32 %v2005, %v2646
      %v2648 = vand.u32 %v2647, 4294901760
      %2649 = vmatmul.mubr.f32.gmra.mrb[0].mxu0 %v2648
      %v2650 = vpop.f32.mrb[0].mxu0
      %v2651 = vadd.f32 %v2524, %v2650
      %v2652 = vpop.f32.mrb[0].mxu0
      %v2653 = vand.u32 %v2041, 4294901760
      %v2654 = vsub.f32 %v2041, %v2653
      %v2655 = vand.u32 %v2654, 4294901760
      %2656 = vmatprep.mubr.f32.mxu0 %v2655
      %v2657 = vand.u32 %v2007, 4294901760
      %v2658 = vsub.f32 %v2007, %v2657
      %v2659 = vand.u32 %v2658, 4294901760
      %2660 = vmatmul.mubr.f32.gmra.mrb[0].mxu0 %v2659
      %v2661 = vpop.f32.mrb[0].mxu0
      %v2662 = vadd.f32 %v2533, %v2661
      %v2663 = vpop.f32.mrb[0].mxu0
      %v2664 = vand.u32 %v2044, 4294901760
      %v2665 = vsub.f32 %v2044, %v2664
      %v2666 = vand.u32 %v2665, 4294901760
      %2667 = vmatprep.mubr.f32.mxu0 %v2666
      %v2668 = vand.u32 %v2009, 4294901760
      %v2669 = vsub.f32 %v2009, %v2668
      %v2670 = vand.u32 %v2669, 4294901760
      %2671 = vmatmul.mubr.f32.gmra.mrb[0].mxu0 %v2670
      %v2672 = vpop.f32.mrb[0].mxu0
      %v2673 = vadd.f32 %v2542, %v2672
      %v2674 = vpop.f32.mrb[0].mxu0
      %2675 = vdwg.mxu0
      %2676 = vmatprep.subr.mxu0 0.0
      %v2677 = vand.u32 %v2011, 4294901760
      %v2678 = vsub.f32 %v2011, %v2677
      %v2679 = vand.u32 %v2678, 4294901760
      %2680 = vmatpush1.msra.mxu0 %v2679
      %2681 = vmatprep.subr.mxu0 0.0
      %v2682 = vand.u32 %v2012, 4294901760
      %v2683 = vsub.f32 %v2012, %v2682
      %v2684 = vand.u32 %v2683, 4294901760
      %2685 = vmatpush1.msra.mxu0 %v2684
      %2686 = vmatprep.subr.mxu0 0.0
      %v2687 = vand.u32 %v2013, 4294901760
      %v2688 = vsub.f32 %v2013, %v2687
      %v2689 = vand.u32 %v2688, 4294901760
      %2690 = vmatpush1.msra.mxu0 %v2689
      %2691 = vmatprep.subr.mxu0 0.0
      %v2692 = vand.u32 %v2014, 4294901760
      %v2693 = vsub.f32 %v2014, %v2692
      %v2694 = vand.u32 %v2693, 4294901760
      %2695 = vmatpush1.msra.mxu0 %v2694
      %2696 = vmatprep.subr.mxu0 0.0
      %v2697 = vand.u32 %v2015, 4294901760
      %v2698 = vsub.f32 %v2015, %v2697
      %v2699 = vand.u32 %v2698, 4294901760
      %2700 = vmatpush1.msra.mxu0 %v2699
      %2701 = vmatprep.subr.mxu0 0.0
      %v2702 = vand.u32 %v2016, 4294901760
      %v2703 = vsub.f32 %v2016, %v2702
      %v2704 = vand.u32 %v2703, 4294901760
      %2705 = vmatpush1.msra.mxu0 %v2704
      %2706 = vmatprep.subr.mxu0 0.0
      %v2707 = vand.u32 %v2017, 4294901760
      %v2708 = vsub.f32 %v2017, %v2707
      %v2709 = vand.u32 %v2708, 4294901760
      %2710 = vmatpush1.msra.mxu0 %v2709
      %2711 = vmatprep.subr.mxu0 0.0
      %v2712 = vand.u32 %v2018, 4294901760
      %v2713 = vsub.f32 %v2018, %v2712
      %v2714 = vand.u32 %v2713, 4294901760
      %2715 = vmatpush1.msra.mxu0 %v2714
      %2716 = vmatprep.subr.mxu0 0.0
      %v2717 = vand.u32 %v2019, 4294901760
      %v2718 = vsub.f32 %v2019, %v2717
      %v2719 = vand.u32 %v2718, 4294901760
      %2720 = vmatpush1.msra.mxu0 %v2719
      %2721 = vmatprep.subr.mxu0 0.0
      %v2722 = vand.u32 %v2020, 4294901760
      %v2723 = vsub.f32 %v2020, %v2722
      %v2724 = vand.u32 %v2723, 4294901760
      %2725 = vmatpush1.msra.mxu0 %v2724
      %2726 = vmatprep.subr.mxu0 0.0
      %v2727 = vand.u32 %v2021, 4294901760
      %v2728 = vsub.f32 %v2021, %v2727
      %v2729 = vand.u32 %v2728, 4294901760
      %2730 = vmatpush1.msra.mxu0 %v2729
      %2731 = vmatprep.subr.mxu0 0.0
      %v2732 = vand.u32 %v2022, 4294901760
      %v2733 = vsub.f32 %v2022, %v2732
      %v2734 = vand.u32 %v2733, 4294901760
      %2735 = vmatpush1.msra.mxu0 %v2734
      %2736 = vmatprep.subr.mxu0 0.0
      %v2737 = vand.u32 %v2023, 4294901760
      %v2738 = vsub.f32 %v2023, %v2737
      %v2739 = vand.u32 %v2738, 4294901760
      %2740 = vmatpush1.msra.mxu0 %v2739
      %2741 = vmatprep.subr.mxu0 0.0
      %v2742 = vand.u32 %v2024, 4294901760
      %v2743 = vsub.f32 %v2024, %v2742
      %v2744 = vand.u32 %v2743, 4294901760
      %2745 = vmatpush1.msra.mxu0 %v2744
      %2746 = vmatprep.subr.mxu0 0.0
      %v2747 = vand.u32 %v2025, 4294901760
      %v2748 = vsub.f32 %v2025, %v2747
      %v2749 = vand.u32 %v2748, 4294901760
      %2750 = vmatpush1.msra.mxu0 %v2749
      %2751 = vmatprep.subr.mxu0 0.0
      %v2752 = vand.u32 %v2026, 4294901760
      %v2753 = vsub.f32 %v2026, %v2752
      %v2754 = vand.u32 %v2753, 4294901760
      %2755 = vmatpush1.msra.mxu0 %v2754
      %2756 = vmatprep.subr.mxu0 0.0
      %v2757 = vand.u32 %v2027, 4294901760
      %v2758 = vsub.f32 %v2027, %v2757
      %v2759 = vand.u32 %v2758, 4294901760
      %2760 = vmatpush1.msra.mxu0 %v2759
      %2761 = vmatprep.subr.mxu0 0.0
      %v2762 = vand.u32 %v2028, 4294901760
      %v2763 = vsub.f32 %v2028, %v2762
      %v2764 = vand.u32 %v2763, 4294901760
      %2765 = vmatpush1.msra.mxu0 %v2764
      %2766 = vmatprep.subr.mxu0 0.0
      %v2767 = vand.u32 %v2029, 4294901760
      %v2768 = vsub.f32 %v2029, %v2767
      %v2769 = vand.u32 %v2768, 4294901760
      %2770 = vmatpush1.msra.mxu0 %v2769
      %2771 = vmatprep.subr.mxu0 0.0
      %v2772 = vand.u32 %v2030, 4294901760
      %v2773 = vsub.f32 %v2030, %v2772
      %v2774 = vand.u32 %v2773, 4294901760
      %2775 = vmatpush1.msra.mxu0 %v2774
      %2776 = vmatprep.subr.mxu0 0.0
      %v2777 = vand.u32 %v2031, 4294901760
      %v2778 = vsub.f32 %v2031, %v2777
      %v2779 = vand.u32 %v2778, 4294901760
      %2780 = vmatpush1.msra.mxu0 %v2779
      %2781 = vmatprep.subr.mxu0 0.0
      %v2782 = vand.u32 %v2048, 4294901760
      %v2783 = vsub.f32 %v2048, %v2782
      %v2784 = vand.u32 %v2783, 4294901760
      %2785 = vmatpush1.msra.mxu0 %v2784
      %2786 = vmatprep.subr.mxu0 0.0
      %2787 = vmatpush1.msra.mxu0 0.0
      %2788 = vmatprep.subr.mxu0 0.0
      %2789 = vmatpush1.msra.mxu0 0.0
      %2790 = vmatprep.subr.mxu0 0.0
      %2791 = vmatpush1.msra.mxu0 0.0
      %2792 = vmatprep.subr.mxu0 0.0
      %2793 = vmatpush1.msra.mxu0 0.0
      %2794 = vmatprep.subr.mxu0 0.0
      %2795 = vmatpush1.msra.mxu0 0.0
      %2796 = vmatprep.subr.mxu0 0.0
      %2797 = vmatpush1.msra.mxu0 0.0
      %2798 = vmatprep.subr.mxu0 0.0
      %2799 = vmatpush1.msra.mxu0 0.0
      %2800 = vmatprep.subr.mxu0 0.0
      %2801 = vmatpush1.msra.mxu0 0.0
      %2802 = vmatprep.subr.mxu0 0.0
      %2803 = vmatpush1.msra.mxu0 0.0
      %2804 = vmatprep.subr.mxu0 0.0
      %2805 = vmatpush1.msra.mxu0 0.0
      %v2806 = vand.u32 %v2035, 4294901760
      %2807 = vmatprep.mubr.f32.mxu0 %v2806
      %v2808 = vand.u32 %v2003, 4294901760
      %2809 = vmatmul.mubr.f32.gmra.mrb[0].mxu0 %v2808
      %v2810 = vpop.f32.mrb[0].mxu0
      %v2811 = vadd.f32 %v2640, %v2810
      %v2812 = vpop.f32.mrb[0].mxu0
      %v2813 = vand.u32 %v2038, 4294901760
      %2814 = vmatprep.mubr.f32.mxu0 %v2813
      %v2815 = vand.u32 %v2005, 4294901760
      %2816 = vmatmul.mubr.f32.gmra.mrb[0].mxu0 %v2815
      %v2817 = vpop.f32.mrb[0].mxu0
      %v2818 = vadd.f32 %v2651, %v2817
      %v2819 = vpop.f32.mrb[0].mxu0
      %v2820 = vand.u32 %v2041, 4294901760
      %2821 = vmatprep.mubr.f32.mxu0 %v2820
      %v2822 = vand.u32 %v2007, 4294901760
      %2823 = vmatmul.mubr.f32.gmra.mrb[0].mxu0 %v2822
      %v2824 = vpop.f32.mrb[0].mxu0
      %v2825 = vadd.f32 %v2662, %v2824
      %v2826 = vpop.f32.mrb[0].mxu0
      %v2827 = vand.u32 %v2044, 4294901760
      %2828 = vmatprep.mubr.f32.mxu0 %v2827
      %v2829 = vand.u32 %v2009, 4294901760
      %2830 = vmatmul.mubr.f32.gmra.mrb[0].mxu0 %v2829
      %v2831 = vpop.f32.mrb[0].mxu0
      %v2832 = vadd.f32 %v2673, %v2831
      %v2833 = vpop.f32.mrb[0].mxu0
      %2834 = vdwg.mxu0
      %2835 = vmatprep.subr.mxu0 0.0
      %v2836 = vand.u32 %v2011, 4294901760
      %2837 = vmatpush1.msra.mxu0 %v2836
      %2838 = vmatprep.subr.mxu0 0.0
      %v2839 = vand.u32 %v2012, 4294901760
      %2840 = vmatpush1.msra.mxu0 %v2839
      %2841 = vmatprep.subr.mxu0 0.0
      %v2842 = vand.u32 %v2013, 4294901760
      %2843 = vmatpush1.msra.mxu0 %v2842
      %2844 = vmatprep.subr.mxu0 0.0
      %v2845 = vand.u32 %v2014, 4294901760
      %2846 = vmatpush1.msra.mxu0 %v2845
      %2847 = vmatprep.subr.mxu0 0.0
      %v2848 = vand.u32 %v2015, 4294901760
      %2849 = vmatpush1.msra.mxu0 %v2848
      %2850 = vmatprep.subr.mxu0 0.0
      %v2851 = vand.u32 %v2016, 4294901760
      %2852 = vmatpush1.msra.mxu0 %v2851
      %2853 = vmatprep.subr.mxu0 0.0
      %v2854 = vand.u32 %v2017, 4294901760
      %2855 = vmatpush1.msra.mxu0 %v2854
      %2856 = vmatprep.subr.mxu0 0.0
      %v2857 = vand.u32 %v2018, 4294901760
      %2858 = vmatpush1.msra.mxu0 %v2857
      %2859 = vmatprep.subr.mxu0 0.0
      %v2860 = vand.u32 %v2019, 4294901760
      %2861 = vmatpush1.msra.mxu0 %v2860
      %2862 = vmatprep.subr.mxu0 0.0
      %v2863 = vand.u32 %v2020, 4294901760
      %2864 = vmatpush1.msra.mxu0 %v2863
      %2865 = vmatprep.subr.mxu0 0.0
      %v2866 = vand.u32 %v2021, 4294901760
      %2867 = vmatpush1.msra.mxu0 %v2866
      %2868 = vmatprep.subr.mxu0 0.0
      %v2869 = vand.u32 %v2022, 4294901760
      %2870 = vmatpush1.msra.mxu0 %v2869
      %2871 = vmatprep.subr.mxu0 0.0
      %v2872 = vand.u32 %v2023, 4294901760
      %2873 = vmatpush1.msra.mxu0 %v2872
      %2874 = vmatprep.subr.mxu0 0.0
      %v2875 = vand.u32 %v2024, 4294901760
      %2876 = vmatpush1.msra.mxu0 %v2875
      %2877 = vmatprep.subr.mxu0 0.0
      %v2878 = vand.u32 %v2025, 4294901760
      %2879 = vmatpush1.msra.mxu0 %v2878
      %2880 = vmatprep.subr.mxu0 0.0
      %v2881 = vand.u32 %v2026, 4294901760
      %2882 = vmatpush1.msra.mxu0 %v2881
      %2883 = vmatprep.subr.mxu0 0.0
      %v2884 = vand.u32 %v2027, 4294901760
      %2885 = vmatpush1.msra.mxu0 %v2884
      %2886 = vmatprep.subr.mxu0 0.0
      %v2887 = vand.u32 %v2028, 4294901760
      %2888 = vmatpush1.msra.mxu0 %v2887
      %2889 = vmatprep.subr.mxu0 0.0
      %v2890 = vand.u32 %v2029, 4294901760
      %2891 = vmatpush1.msra.mxu0 %v2890
      %2892 = vmatprep.subr.mxu0 0.0
      %v2893 = vand.u32 %v2030, 4294901760
      %2894 = vmatpush1.msra.mxu0 %v2893
      %2895 = vmatprep.subr.mxu0 0.0
      %v2896 = vand.u32 %v2031, 4294901760
      %2897 = vmatpush1.msra.mxu0 %v2896
      %2898 = vmatprep.subr.mxu0 0.0
      %v2899 = vand.u32 %v2048, 4294901760
      %2900 = vmatpush1.msra.mxu0 %v2899
      %2901 = vmatprep.subr.mxu0 0.0
      %2902 = vmatpush1.msra.mxu0 0.0
      %2903 = vmatprep.subr.mxu0 0.0
      %2904 = vmatpush1.msra.mxu0 0.0
      %2905 = vmatprep.subr.mxu0 0.0
      %2906 = vmatpush1.msra.mxu0 0.0
      %2907 = vmatprep.subr.mxu0 0.0
      %2908 = vmatpush1.msra.mxu0 0.0
      %2909 = vmatprep.subr.mxu0 0.0
      %2910 = vmatpush1.msra.mxu0 0.0
      %2911 = vmatprep.subr.mxu0 0.0
      %2912 = vmatpush1.msra.mxu0 0.0
      %2913 = vmatprep.subr.mxu0 0.0
      %2914 = vmatpush1.msra.mxu0 0.0
      %2915 = vmatprep.subr.mxu0 0.0
      %2916 = vmatpush1.msra.mxu0 0.0
      %2917 = vmatprep.subr.mxu0 0.0
      %2918 = vmatpush1.msra.mxu0 0.0
      %2919 = vmatprep.subr.mxu0 0.0
      %2920 = vmatpush1.msra.mxu0 0.0
      %v2921 = vand.u32 %v2035, 4294901760
      %2922 = vmatprep.mubr.f32.mxu0 %v2921
      %v2923 = vand.u32 %v2003, 4294901760
      %2924 = vmatmul.mubr.f32.gmra.mrb[0].mxu0 %v2923
      %v2925 = vpop.f32.mrb[0].mxu0
      %v2926 = vadd.f32 %v2811, %v2925
      %v2927 = vpop.f32.mrb[0].mxu0
      %v2928 = vand.u32 %v2038, 4294901760
      %2929 = vmatprep.mubr.f32.mxu0 %v2928
      %v2930 = vand.u32 %v2005, 4294901760
      %2931 = vmatmul.mubr.f32.gmra.mrb[0].mxu0 %v2930
      %v2932 = vpop.f32.mrb[0].mxu0
      %v2933 = vadd.f32 %v2818, %v2932
      %v2934 = vpop.f32.mrb[0].mxu0
      %v2935 = vand.u32 %v2041, 4294901760
      %2936 = vmatprep.mubr.f32.mxu0 %v2935
      %v2937 = vand.u32 %v2007, 4294901760
      %2938 = vmatmul.mubr.f32.gmra.mrb[0].mxu0 %v2937
      %v2939 = vpop.f32.mrb[0].mxu0
      %v2940 = vadd.f32 %v2825, %v2939
      %v2941 = vpop.f32.mrb[0].mxu0
      %v2942 = vand.u32 %v2044, 4294901760
      %2943 = vmatprep.mubr.f32.mxu0 %v2942
      %v2944 = vand.u32 %v2009, 4294901760
      %2945 = vmatmul.mubr.f32.gmra.mrb[0].mxu0 %v2944
      %v2946 = vpop.f32.mrb[0].mxu0
      %v2947 = vadd.f32 %v2832, %v2946
      %v2948 = vpop.f32.mrb[0].mxu0
      %2949 = vdwg.mxu0
      %vm2950 = vcmask 56320
      %2951 = vst.msk [vmem:[%s202] sm:$0xff] %vm2950, %v2926
      %2952 = vst.msk [vmem:[%s202 + $0x8] sm:$0xff] %vm2950, %v2933
      %2953 = vst.msk [vmem:[%s202 + $0x10] sm:$0xff] %vm2950, %v2940
      %2954 = vst.msk [vmem:[%s202 + $0x18] sm:$0xff] %vm2950, %v2947
      %s2955 = smul.u32 4, %s15
      %p2956 = scmp.lt.s32.totalorder %s2955, 15
      %s2957 = scalar_select %p2956, %s2955, 15
      %s2958 = smul.addr %s2957, 8
      %s2959 = scalar_lea.vmem %s4, %s2958
      // Predicated region
      $region37: #{tpu_custom_call.1} parent=35 // pred_check
        %p2960 = pneg %p122
      $region38: #{tpu_custom_call.1} parent=35 // pred_check_branch
        %2962 = sbr.rel (%p2960) target = $region40
      $region39: #{tpu_custom_call.1} parent=35 // pred_region
        %s2963 = smul.u32 4, %s15
      $region40: #{tpu_custom_call.1} parent=35 // pred_fallthru
        _
    $region36: #{tpu_custom_call.1} parent=5 // pred_fallthru
      _
    %p2964 = scmp.le.s32.totalorder 2, %s10
    // Predicated region
    $region41: #{tpu_custom_call.1} parent=5 // pred_check
      %p2965 = pneg %p2964
    $region42: #{tpu_custom_call.1} parent=5 // pred_check_branch
      %2967 = sbr.rel (%p2965) target = $region44
    $region43: #{tpu_custom_call.1} parent=5 // pred_region
      %s2968 = ssub.s32 %s10, 2
      // Predicated region
      $region45: #{tpu_custom_call.1} parent=43 // pred_check
        %p2969 = pneg %p128
      $region46: #{tpu_custom_call.1} parent=43 // pred_check_branch
        %2971 = sbr.rel (%p2969) target = $region48
      $region47: #{tpu_custom_call.1} parent=43 // pred_region
        %s2972 = smul.u32 4, %s16
        %p2973 = scmp.lt.s32.totalorder %s2972, 15
        %s2974 = scalar_select %p2973, %s2972, 15
        %s2975 = smul.addr %s2974, 8
        %s2976 = scalar_lea.vmem %s4, %s2975
      $region48: #{tpu_custom_call.1} parent=43 // pred_fallthru
        _
    $region44: #{tpu_custom_call.1} parent=5 // pred_fallthru
      _
  $region6: #{tpu_custom_call.1} parent=0 // loop_footer
    %s14 = sadd.s32 1, %s10
  $region7: #{tpu_custom_call.1} parent=0 // loop_footer_branch
    %9 = sbr.rel target = $region3
  $region8: #{tpu_custom_call.1} parent=0 // loop_exit
    _

</llo_original>
